<compile_context>
chip_gen: v7x
topology: tpu7x:2x2x1
jax: 0.10.0
libtpu: 0.0.40
codegen_flags: <defaults>
</compile_context>

<pallas_src>
import jax
import jax.numpy as jnp
import numpy as np
from jax import lax
from jax.experimental import pallas as pl
from jax.experimental.pallas import tpu as pltpu

K = 15            # conv kernel size along H
PAD = (K - 1) // 2


def _round_up(x, m):
    return ((x + m - 1) // m) * m


def _kernel(w1_ref, b1_ref, w2_ref, b2_ref, x_ref, out_ref):
    # w*_ref : (CHp, CHp)  banded conv weights with BN scale folded in (VMEM)
    # b*_ref : (CHp, 1)    folded BN biases replicated over H (VMEM)
    # x_ref  : (CHp, TN)   input tile, rows = ci*H + h, lanes = batch*width cols
    # out_ref: (CHp, TN)
    x = x_ref[...]

    # conv1 + bn1 (scale folded into w1, bias added here) + relu  -> one MXU matmul
    h1 = jnp.dot(w1_ref[...], x,
                 preferred_element_type=jnp.float32,
                 precision=lax.Precision.HIGHEST)
    h1 = jnp.maximum(h1 + b1_ref[...], 0.0)

    # conv2 + bn2 + residual + relu  -> one MXU matmul
    h2 = jnp.dot(w2_ref[...], h1,
                 preferred_element_type=jnp.float32,
                 precision=lax.Precision.HIGHEST)
    out_ref[...] = jnp.maximum(h2 + b2_ref[...] + x, 0.0)


def _band_matrix(w, scale, H, CHp):
    """(Cout, Cin, K, 1) conv weights -> (CHp, CHp) block-banded matrix with the
    BN scale folded into its output rows.  Row = co*H + ho, Col = ci*H + hi."""
    Cout, Cin = w.shape[0], w.shape[1]
    w3 = w[:, :, :, 0].astype(jnp.float32)                    # (Cout, Cin, K)
    ho = jnp.arange(H)[:, None]
    hi = jnp.arange(H)[None, :]
    k = hi - ho + PAD                                         # (H, H) tap index
    valid = ((k >= 0) & (k < K)).astype(jnp.float32)
    kc = jnp.clip(k, 0, K - 1)
    band = w3[:, :, kc] * valid[None, None]                   # (Cout, Cin, H, H)
    band = band * scale.astype(jnp.float32)[:, None, None, None]
    band = jnp.transpose(band, (0, 2, 1, 3)).reshape(Cout * H, Cin * H)
    return jnp.pad(band, ((0, CHp - Cout * H), (0, CHp - Cin * H)))


def aud_basic_block(x_nchw, w1, w2, bn1, bn2, eps=1e-5):
    """x_nchw: (B, Cin, H, W); w*: (Cout, Cin, 15, 1) PyTorch layout;
    bn*: dict(gamma, beta, mean, var) (BatchNorm in eval mode)."""
    B, Cin, H, W = x_nchw.shape
    Cout = w1.shape[0]
    # TODO(synk): stride>1 / downsample branch of Aud_BasicBlock not implemented
    # (module defaults: stride=1, downsample=None, inplanes == planes).
    assert Cin == Cout, "no downsample branch: inplanes must equal planes"

    CH = Cin * H
    CHp = _round_up(CH, 8)                       # sublane-aligned row count
    N = B * W

    # Lane tiling: always a multiple of 128 (unmasked stores), and always at
    # least 2 grid steps so v7x's two TensorCores both get work.
    TN = 512 if N >= 1024 else 128
    N_pad = _round_up(max(N, 1), TN)
    if N_pad // TN < 2:
        N_pad = 2 * TN

    # (B, Cin, H, W) -> (Cin, H, B, W) -> (Cin*H, B*W); pad rows/lanes with zeros.
    x_mat = jnp.transpose(x_nchw.astype(jnp.float32), (1, 2, 0, 3)).reshape(CH, N)
    x_mat = jnp.pad(x_mat, ((0, CHp - CH), (0, N_pad - N)))

    def fold(bn):
        scale = bn["gamma"].astype(jnp.float32) / jnp.sqrt(
            bn["var"].astype(jnp.float32) + eps)
        bias = bn["beta"].astype(jnp.float32) - bn["mean"].astype(jnp.float32) * scale
        return scale, bias

    s1, bias1 = fold(bn1)
    s2, bias2 = fold(bn2)

    w1_band = _band_matrix(w1, s1, H, CHp)                     # (CHp, CHp)
    w2_band = _band_matrix(w2, s2, H, CHp)
    b1_vec = jnp.pad(jnp.repeat(bias1, H), (0, CHp - CH)).reshape(CHp, 1)
    b2_vec = jnp.pad(jnp.repeat(bias2, H), (0, CHp - CH)).reshape(CHp, 1)

    out = pl.pallas_call(
        _kernel,
        out_shape=jax.ShapeDtypeStruct((CHp, N_pad), jnp.float32),
        grid_spec=pltpu.PrefetchScalarGridSpec(
            num_scalar_prefetch=0,
            grid=(N_pad // TN,),
            in_specs=[
                pl.BlockSpec((CHp, CHp), lambda n: (0, 0)),    # w1 band
                pl.BlockSpec((CHp, 1), lambda n: (0, 0)),      # b1
                pl.BlockSpec((CHp, CHp), lambda n: (0, 0)),    # w2 band
                pl.BlockSpec((CHp, 1), lambda n: (0, 0)),      # b2
                pl.BlockSpec((CHp, TN), lambda n: (0, n)),     # x tile
            ],
            out_specs=pl.BlockSpec((CHp, TN), lambda n: (0, n)),
        ),
        compiler_params=pltpu.CompilerParams(
            dimension_semantics=("parallel",),
            vmem_limit_bytes=32 * 1024 * 1024),
    )(w1_band, b1_vec, w2_band, b2_vec, x_mat)

    out = out[:CH, :N].reshape(Cout, H, B, W)
    return jnp.transpose(out, (2, 0, 1, 3))                    # (B, Cout, H, W)


def reference_forward(x, w1, w2, bn1, bn2, eps=1e-5):
    """Pure-JAX reference matching the PyTorch forward (BN in eval mode)."""
    def conv(a, w):
        return lax.conv_general_dilated(
            a, w, window_strides=(1, 1), padding=((PAD, PAD), (0, 0)),
            dimension_numbers=("NCHW", "OIHW", "NCHW"),
            precision=lax.Precision.HIGHEST)

    def bn(a, p):
        scale = (p["gamma"] / jnp.sqrt(p["var"] + eps)).reshape(1, -1, 1, 1)
        bias = (p["beta"] - p["mean"] * p["gamma"]
                / jnp.sqrt(p["var"] + eps)).reshape(1, -1, 1, 1)
        return a * scale + bias

    out = jnp.maximum(bn(conv(x, w1), bn1), 0.0)
    out = bn(conv(out, w2), bn2)
    return jnp.maximum(out + x, 0.0)


if __name__ == "__main__":
    B, C, H, W = 2, 4, 16, 16          # inplanes = planes = 4, stride = 1
    key = jax.random.PRNGKey(0)
    ks = jax.random.split(key, 9)

    x = jax.random.normal(ks[0], (B, C, H, W), jnp.float32)
    w1 = jax.random.normal(ks[1], (C, C, K, 1), jnp.float32) * 0.1
    w2 = jax.random.normal(ks[2], (C, C, K, 1), jnp.float32) * 0.1
    bn1 = dict(gamma=jax.random.uniform(ks[3], (C,), minval=0.5, maxval=1.5),
               beta=jax.random.normal(ks[4], (C,)) * 0.1,
               mean=jax.random.normal(ks[5], (C,)) * 0.1,
               var=jax.random.uniform(ks[6], (C,), minval=0.5, maxval=1.5))
    bn2 = dict(gamma=jax.random.uniform(ks[7], (C,), minval=0.5, maxval=1.5),
               beta=jax.random.normal(ks[8], (C,)) * 0.1,
               mean=jnp.zeros((C,)),
               var=jnp.ones((C,)))

    out = jax.block_until_ready(aud_basic_block(x, w1, w2, bn1, bn2))
    ref = jax.block_until_ready(reference_forward(x, w1, w2, bn1, bn2))

    np.testing.assert_allclose(np.asarray(out), np.asarray(ref),
                               atol=1e-4, rtol=1e-4)
    print("KERNEL_OK")
</pallas_src>

<mosaic_0001>
module attributes {stable_mosaic.version = 11 : i64} {
  func.func @_kernel(%arg0: i32, %arg1: memref<64x64xf32, #tpu.memory_space<vmem>>, %arg2: memref<64x1xf32, #tpu.memory_space<vmem>>, %arg3: memref<64x64xf32, #tpu.memory_space<vmem>>, %arg4: memref<64x1xf32, #tpu.memory_space<vmem>>, %arg5: memref<64x128xf32, #tpu.memory_space<vmem>>, %arg6: memref<64x128xf32, #tpu.memory_space<vmem>>) attributes {dimension_semantics = [#tpu.dimension_semantics<parallel>], iteration_bounds = array<i64: 2>, scalar_prefetch = 0 : i64, scratch_operands = 0 : i64, tpu.core_type = #tpu.core_type<tc>, window_params = [{pipeline_mode = #tpu.pipeline_mode<synchronous>, transform_indices = @transform_0, window_bounds = array<i64: 64, 64>}, {pipeline_mode = #tpu.pipeline_mode<synchronous>, transform_indices = @transform_1, window_bounds = array<i64: 64, 1>}, {pipeline_mode = #tpu.pipeline_mode<synchronous>, transform_indices = @transform_2, window_bounds = array<i64: 64, 64>}, {pipeline_mode = #tpu.pipeline_mode<synchronous>, transform_indices = @transform_3, window_bounds = array<i64: 64, 1>}, {transform_indices = @transform_4, window_bounds = array<i64: 64, 128>}, {transform_indices = @transform_5, window_bounds = array<i64: 64, 128>}]} {
    %c0 = arith.constant 0 : index
    %c0_0 = arith.constant 0 : index
    %0 = vector.load %arg5[%c0, %c0_0] : memref<64x128xf32, #tpu.memory_space<vmem>>, vector<64x128xf32>
    %c0_1 = arith.constant 0 : index
    %c0_2 = arith.constant 0 : index
    %1 = vector.load %arg1[%c0_1, %c0_2] : memref<64x64xf32, #tpu.memory_space<vmem>>, vector<64x64xf32>
    %cst = arith.constant dense<0.000000e+00> : vector<64x128xf32>
    %2 = tpu.matmul %1, %0, %cst {dimension_numbers = #tpu.dot_dimension_numbers<[1], [0], [0], [1], [0, 0, 1, 1], [], []>, precision = #tpu.contract_precision<fp32>} : vector<64x64xf32>, vector<64x128xf32>, vector<64x128xf32> -> vector<64x128xf32>
    %c0_3 = arith.constant 0 : index
    %c0_4 = arith.constant 0 : index
    %3 = vector.load %arg2[%c0_3, %c0_4] : memref<64x1xf32, #tpu.memory_space<vmem>>, vector<64x1xf32>
    %4 = vector.broadcast %3 : vector<64x1xf32> to vector<64x128xf32>
    %5 = arith.addf %2, %4 : vector<64x128xf32>
    %cst_5 = arith.constant 0.000000e+00 : f32
    %6 = vector.broadcast %cst_5 : f32 to vector<64x128xf32>
    %7 = arith.maximumf %5, %6 : vector<64x128xf32>
    %c0_6 = arith.constant 0 : index
    %c0_7 = arith.constant 0 : index
    %8 = vector.load %arg3[%c0_6, %c0_7] : memref<64x64xf32, #tpu.memory_space<vmem>>, vector<64x64xf32>
    %cst_8 = arith.constant dense<0.000000e+00> : vector<64x128xf32>
    %9 = tpu.matmul %8, %7, %cst_8 {dimension_numbers = #tpu.dot_dimension_numbers<[1], [0], [0], [1], [0, 0, 1, 1], [], []>, precision = #tpu.contract_precision<fp32>} : vector<64x64xf32>, vector<64x128xf32>, vector<64x128xf32> -> vector<64x128xf32>
    %c0_9 = arith.constant 0 : index
    %c0_10 = arith.constant 0 : index
    %10 = vector.load %arg4[%c0_9, %c0_10] : memref<64x1xf32, #tpu.memory_space<vmem>>, vector<64x1xf32>
    %11 = vector.broadcast %10 : vector<64x1xf32> to vector<64x128xf32>
    %12 = arith.addf %9, %11 : vector<64x128xf32>
    %13 = arith.addf %12, %0 : vector<64x128xf32>
    %cst_11 = arith.constant 0.000000e+00 : f32
    %14 = vector.broadcast %cst_11 : f32 to vector<64x128xf32>
    %15 = arith.maximumf %13, %14 : vector<64x128xf32>
    %c0_12 = arith.constant 0 : index
    %c0_13 = arith.constant 0 : index
    %16 = vector.load %arg6[%c0_12, %c0_13] : memref<64x128xf32, #tpu.memory_space<vmem>>, vector<64x128xf32>
    tpu.vector_store %arg6[%c0_12, %c0_13], %15 {strides = array<i32>} : memref<64x128xf32, #tpu.memory_space<vmem>>, vector<64x128xf32>,
    return
  }
  func.func @transform_0(%arg0: i32) -> (i32, i32) {
    %c0_i32 = arith.constant 0 : i32
    %c0_i32_0 = arith.constant 0 : i32
    %c0_i32_1 = arith.constant 0 : i32
    return %c0_i32, %c0_i32_0 : i32, i32
  }
  func.func @transform_1(%arg0: i32) -> (i32, i32) {
    %c0_i32 = arith.constant 0 : i32
    %c0_i32_0 = arith.constant 0 : i32
    %c0_i32_1 = arith.constant 0 : i32
    return %c0_i32, %c0_i32_0 : i32, i32
  }
  func.func @transform_2(%arg0: i32) -> (i32, i32) {
    %c0_i32 = arith.constant 0 : i32
    %c0_i32_0 = arith.constant 0 : i32
    %c0_i32_1 = arith.constant 0 : i32
    return %c0_i32, %c0_i32_0 : i32, i32
  }
  func.func @transform_3(%arg0: i32) -> (i32, i32) {
    %c0_i32 = arith.constant 0 : i32
    %c0_i32_0 = arith.constant 0 : i32
    %c0_i32_1 = arith.constant 0 : i32
    return %c0_i32, %c0_i32_0 : i32, i32
  }
  func.func @transform_4(%arg0: i32) -> (i32, i32) {
    %c0_i32 = arith.constant 0 : i32
    %c0_i32_0 = arith.constant 0 : i32
    return %c0_i32, %arg0 : i32, i32
  }
  func.func @transform_5(%arg0: i32) -> (i32, i32) {
    %c0_i32 = arith.constant 0 : i32
    %c0_i32_0 = arith.constant 0 : i32
    return %c0_i32, %arg0 : i32, i32
  }
}

</mosaic_0001>

<llo_original>
// kernel: tpu_custom_call.1
$region0: #{tpu_custom_call.1}
  #allocation0 [shape = 'u32[]', space=smem, size = 0x4, offset = 0x4, fixed_abs, tag = 'smem constant byte address 0x4 - core index']
  #allocation1 [shape = 'u32[144,128]{1,0:T(1,128)}', space=vmem, size = 0x12000, scoped, tag = 'internal scratch']
  %s0 = inlined_call_operand.hbm [shape: f32[64,64], index: 0, kind: input, shape index: {}]
  %s1 = inlined_call_operand.vmem [shape: f32[64,1], index: 1, kind: input, shape index: {}]
  %s2 = inlined_call_operand.hbm [shape: f32[64,64], index: 2, kind: input, shape index: {}]
  %s3 = inlined_call_operand.vmem [shape: f32[64,1], index: 3, kind: input, shape index: {}]
  %s4 = inlined_call_operand.vmem [shape: f32[64,256], index: 4, kind: input, shape index: {}]
  %s5 = inlined_call_operand.hbm [shape: f32[64,256], index: 5, kind: output, shape index: {}]
  %s6 = sld [smem:[#allocation0]]
  $region99: #{tpu_custom_call.1} parent=0
    _
  %s8 = ssub.s32 1, %s6
  %s9 = scalar_select 0, %s8, %s6
  $region1: #{tpu_custom_call.1} parent=0
    #allocation2 [shape = 'u8[32768]{0}', space=vmem, size = 0x8000, scoped, tag = 'input window, operand 0, single buffered']
    #allocation3 [shape = 's32[2]{0}', space=sflag, size = 0x8, scoped, tag = 'scoped memory for tpu_custom_call.1']
    #allocation4 [shape = 's32[2]{0}', space=sflag, size = 0x8, scoped, tag = 'scoped memory for tpu_custom_call.1']
    #allocation5 [shape = 'u8[32768]{0}', space=vmem, size = 0x8000, scoped, tag = 'input window, operand 2, single buffered']
    #allocation6 [shape = 's32[1]{0}', space=sflag, size = 0x4, scoped, tag = 'scoped memory for tpu_custom_call.1']
    #allocation7 [shape = 'u8[65536]{0}', space=vmem, size = 0x10000, scoped, tag = 'input window, operand 4']
    #allocation8 [shape = 'u8[65536]{0}', space=vmem, size = 0x10000, scoped, tag = 'output window, operand 0']
    %10 = vsyncpa [#allocation3], 0
    %11 = vsyncpa [#allocation6], 0
    %12 = vsyncpa [#allocation4], 0
    %s13 = scalar_lea.sflag [#allocation4], 1
    %14 = vsyncpa %s13, 0
    loop: start=0, step=1, limit=4
    $region2: #{tpu_custom_call.1} parent=1 // loop_pre_header
      _
    $region3: #{tpu_custom_call.1} parent=1 // loop_header
      %s16 = sphi 0, %s20
      %p17 = scmp.ge.s32.totalorder %s16, 4
      %s24 = sphi 0, %s24
      %s26 = sphi 0, %s24
      %s27 = sphi 0, %s26
      %s41 = sphi 0, %s27
      %s45 = sphi 0, %s45
      %s47 = sphi 0, %s45
      %s48 = sphi 0, %s47
      %s62 = sphi 0, %s48
      %s66 = sphi 0, %s66
      %s68 = sphi 0, %s66
      %s69 = sphi 0, %s68
      %s83 = sphi 0, %s69
      %s87 = sphi 0, %s87
      %s89 = sphi 0, %s87
      %s90 = sphi 0, %s89
      %s104 = sphi 0, %s90
      %s110 = sphi 0, %s112
      %s113 = sphi 0, %s110
      %s114 = sphi 0, %s113
      %s130 = sphi 0, %s114
      %s136 = sphi 0, %s138
      %s139 = sphi 0, %s136
      %s140 = sphi 0, %s139
      %s156 = sphi 0, %s140
    $region4: #{tpu_custom_call.1} parent=1 // loop_header_branch
      %19 = sbr.rel (%p17) target = $region8
    $region5: #{tpu_custom_call.1} parent=1 // loop_body
      %s21 = ssub.s32 %s16, 1
      %s22 = ssub.s32 %s16, 2
      %s23 = sadd.s32 %s16, 1
      %s25 = sadd.s32 %s24, 1
      %p28 = scmp.eq.s32.totalorder %s16, 1
      %p29 = scmp.ne.s32.totalorder %s24, %s26
      %p30 = scmp.eq.s32.totalorder %s16, 0
      %p31 = por %p29, %p30
      %p32 = scmp.ne.s32.totalorder %s24, %s26
      %p33 = scmp.eq.s32.totalorder %s21, 1
      %p34 = por %p32, %p33
      %p35 = scmp.ne.s32.totalorder %s26, %s27
      %p36 = scmp.eq.s32.totalorder %s21, 0
      %p37 = por %p35, %p36
      %p38 = scmp.ne.s32.totalorder %s26, %s27
      %p39 = scmp.eq.s32.totalorder %s22, 1
      %p40 = por %p38, %p39
      %p42 = scmp.ne.s32.totalorder %s27, %s41
      %p43 = scmp.eq.s32.totalorder %s22, 0
      %p44 = por %p42, %p43
      %s46 = sadd.s32 %s45, 1
      %p49 = scmp.eq.s32.totalorder %s16, 1
      %p50 = scmp.ne.s32.totalorder %s45, %s47
      %p51 = scmp.eq.s32.totalorder %s16, 0
      %p52 = por %p50, %p51
      %p53 = scmp.ne.s32.totalorder %s45, %s47
      %p54 = scmp.eq.s32.totalorder %s21, 1
      %p55 = por %p53, %p54
      %p56 = scmp.ne.s32.totalorder %s47, %s48
      %p57 = scmp.eq.s32.totalorder %s21, 0
      %p58 = por %p56, %p57
      %p59 = scmp.ne.s32.totalorder %s47, %s48
      %p60 = scmp.eq.s32.totalorder %s22, 1
      %p61 = por %p59, %p60
      %p63 = scmp.ne.s32.totalorder %s48, %s62
      %p64 = scmp.eq.s32.totalorder %s22, 0
      %p65 = por %p63, %p64
      %s67 = sadd.s32 %s66, 1
      %p70 = scmp.eq.s32.totalorder %s16, 1
      %p71 = scmp.ne.s32.totalorder %s66, %s68
      %p72 = scmp.eq.s32.totalorder %s16, 0
      %p73 = por %p71, %p72
      %p74 = scmp.ne.s32.totalorder %s66, %s68
      %p75 = scmp.eq.s32.totalorder %s21, 1
      %p76 = por %p74, %p75
      %p77 = scmp.ne.s32.totalorder %s68, %s69
      %p78 = scmp.eq.s32.totalorder %s21, 0
      %p79 = por %p77, %p78
      %p80 = scmp.ne.s32.totalorder %s68, %s69
      %p81 = scmp.eq.s32.totalorder %s22, 1
      %p82 = por %p80, %p81
      %p84 = scmp.ne.s32.totalorder %s69, %s83
      %p85 = scmp.eq.s32.totalorder %s22, 0
      %p86 = por %p84, %p85
      %s88 = sadd.s32 %s87, 1
      %p91 = scmp.eq.s32.totalorder %s16, 1
      %p92 = scmp.ne.s32.totalorder %s87, %s89
      %p93 = scmp.eq.s32.totalorder %s16, 0
      %p94 = por %p92, %p93
      %p95 = scmp.ne.s32.totalorder %s87, %s89
      %p96 = scmp.eq.s32.totalorder %s21, 1
      %p97 = por %p95, %p96
      %p98 = scmp.ne.s32.totalorder %s89, %s90
      %p99 = scmp.eq.s32.totalorder %s21, 0
      %p100 = por %p98, %p99
      %p101 = scmp.ne.s32.totalorder %s89, %s90
      %p102 = scmp.eq.s32.totalorder %s22, 1
      %p103 = por %p101, %p102
      %p105 = scmp.ne.s32.totalorder %s90, %s104
      %p106 = scmp.eq.s32.totalorder %s22, 0
      %p107 = por %p105, %p106
      %s108 = ssub.s32 %s16, %s23
      %p109 = scmp.eq.s32.totalorder %s108, 0
      %s111 = sadd.s32 %s110, 1
      %s112 = scalar_select %p109, %s110, %s111
      %p115 = pneg %p109
      %p116 = scmp.eq.s32.totalorder %s16, 1
      %p117 = por %p115, %p116
      %p118 = scmp.ne.s32.totalorder %s110, %s113
      %p119 = scmp.eq.s32.totalorder %s16, 0
      %p120 = por %p118, %p119
      %p121 = scmp.ne.s32.totalorder %s110, %s113
      %p122 = scmp.eq.s32.totalorder %s21, 1
      %p123 = por %p121, %p122
      %p124 = scmp.ne.s32.totalorder %s113, %s114
      %p125 = scmp.eq.s32.totalorder %s21, 0
      %p126 = por %p124, %p125
      %p127 = scmp.ne.s32.totalorder %s113, %s114
      %p128 = scmp.eq.s32.totalorder %s22, 1
      %p129 = por %p127, %p128
      %p131 = scmp.ne.s32.totalorder %s114, %s130
      %p132 = scmp.eq.s32.totalorder %s22, 0
      %p133 = por %p131, %p132
      %s134 = ssub.s32 %s16, %s23
      %p135 = scmp.eq.s32.totalorder %s134, 0
      %s137 = sadd.s32 %s136, 1
      %s138 = scalar_select %p135, %s136, %s137
      %p141 = pneg %p135
      %p142 = scmp.eq.s32.totalorder %s16, 1
      %p143 = por %p141, %p142
      %p144 = scmp.ne.s32.totalorder %s136, %s139
      %p145 = scmp.eq.s32.totalorder %s16, 0
      %p146 = por %p144, %p145
      %p147 = scmp.ne.s32.totalorder %s136, %s139
      %p148 = scmp.eq.s32.totalorder %s21, 1
      %p149 = por %p147, %p148
      %p150 = scmp.ne.s32.totalorder %s139, %s140
      %p151 = scmp.eq.s32.totalorder %s21, 0
      %p152 = por %p150, %p151
      %p153 = scmp.ne.s32.totalorder %s139, %s140
      %p154 = scmp.eq.s32.totalorder %s22, 1
      %p155 = por %p153, %p154
      %p157 = scmp.ne.s32.totalorder %s140, %s156
      %p158 = scmp.eq.s32.totalorder %s22, 0
      %p159 = por %p157, %p158
      %p160 = scmp.le.s32.totalorder 1, %s16
      %p161 = scmp.lt.s32.totalorder %s16, 3
      %p162 = pnand %p160, %p161
      %p163 = pneg %p162
      // Predicated region
      $region9: #{tpu_custom_call.1} parent=5 // pred_check
        _
      $region10: #{tpu_custom_call.1} parent=5 // pred_check_branch
        %165 = sbr.rel (%p162) target = $region12
      $region11: #{tpu_custom_call.1} parent=5 // pred_region
        %s166 = ssub.s32 %s16, 1
        // Predicated region
        $region13: #{tpu_custom_call.1} parent=11 // pred_check
          %p167 = pneg %p37
        $region14: #{tpu_custom_call.1} parent=11 // pred_check_branch
          %169 = sbr.rel (%p167) target = $region16
        $region15: #{tpu_custom_call.1} parent=11 // pred_region
          %s171 = ssub.s32 1024, 1024
          %172 = vsyncadd [#allocation3], %s171
          %s173 = sshll.u32 [#allocation2], 4
          %s174 = int_to_ptr.vmem [resolvable:$true] %s173
          %179 = dma.hbm_to_vmem [thread:$0]  %s0, 1024, %s174, [#allocation3], 128, 128, 8
        $region16: #{tpu_custom_call.1} parent=11 // pred_fallthru
          _
        // Predicated region
        $region17: #{tpu_custom_call.1} parent=11 // pred_check
          %p180 = pneg %p58
        $region18: #{tpu_custom_call.1} parent=11 // pred_check_branch
          %182 = sbr.rel (%p180) target = $region20
        $region19: #{tpu_custom_call.1} parent=11 // pred_region
          _
        $region20: #{tpu_custom_call.1} parent=11 // pred_fallthru
          _
        // Predicated region
        $region21: #{tpu_custom_call.1} parent=11 // pred_check
          %p183 = pneg %p79
        $region22: #{tpu_custom_call.1} parent=11 // pred_check_branch
          %185 = sbr.rel (%p183) target = $region24
        $region23: #{tpu_custom_call.1} parent=11 // pred_region
          %s187 = ssub.s32 1024, 1024
          %188 = vsyncadd [#allocation6], %s187
          %s189 = sshll.u32 [#allocation5], 4
          %s190 = int_to_ptr.vmem [resolvable:$true] %s189
          %195 = dma.hbm_to_vmem [thread:$0]  %s2, 1024, %s190, [#allocation6], 128, 128, 8
        $region24: #{tpu_custom_call.1} parent=11 // pred_fallthru
          _
        // Predicated region
        $region25: #{tpu_custom_call.1} parent=11 // pred_check
          %p196 = pneg %p100
        $region26: #{tpu_custom_call.1} parent=11 // pred_check_branch
          %198 = sbr.rel (%p196) target = $region28
        $region27: #{tpu_custom_call.1} parent=11 // pred_region
          _
        $region28: #{tpu_custom_call.1} parent=11 // pred_fallthru
          _
      $region12: #{tpu_custom_call.1} parent=5 // pred_fallthru
        _
      %p199 = scmp.lt.s32.totalorder %s16, 2
      // Predicated region
      $region29: #{tpu_custom_call.1} parent=5 // pred_check
        %p200 = pneg %p199
      $region30: #{tpu_custom_call.1} parent=5 // pred_check_branch
        %202 = sbr.rel (%p200) target = $region32
      $region31: #{tpu_custom_call.1} parent=5 // pred_region
        // Predicated region
        $region33: #{tpu_custom_call.1} parent=31 // pred_check
          %p203 = pneg %p120
        $region34: #{tpu_custom_call.1} parent=31 // pred_check_branch
          %205 = sbr.rel (%p203) target = $region36
        $region35: #{tpu_custom_call.1} parent=31 // pred_region
          %s206 = sand.u32 %s110, 1
          %s207 = sand.u32 %s110, 1
          %s208 = smul.addr %s207, 64
          %s209 = scalar_lea.vmem [#allocation7], %s208
          %s210 = smul.addr %s16, 8
          %s211 = scalar_lea.vmem %s4, %s210
          // Predicated region
          $region37: #{tpu_custom_call.1} parent=35 // pred_check
            _
          $region38: #{tpu_custom_call.1} parent=35 // pred_check_branch
            %213 = sbr.rel (0) target = $region40
          $region39: #{tpu_custom_call.1} parent=35 // pred_region
            // Predicated region
            $region41: #{tpu_custom_call.1} parent=39 // pred_check
              _
            $region42: #{tpu_custom_call.1} parent=39 // pred_check_branch
              %215 = sbr.rel (0) target = $region44
            $region43: #{tpu_custom_call.1} parent=39 // pred_region
              // Predicated region
              $region56: #{tpu_custom_call.1} parent=43 // pred_check
                _
              $region57: #{tpu_custom_call.1} parent=43 // pred_check_branch
                %244 = sbr.rel (0) target = $region59
              $region58: #{tpu_custom_call.1} parent=43 // pred_region
                loop: start=0, step=1, limit=1
                $region60: #{tpu_custom_call.1} parent=58 // loop_pre_header
                  _
                $region61: #{tpu_custom_call.1} parent=58 // loop_header
                  %s246 = sphi 0, %s250
                  %p247 = scmp.ge.s32.totalorder %s246, 1
                  %s251 = sphi %s211, %s211
                  %s252 = sphi %s209, %s209
                $region62: #{tpu_custom_call.1} parent=58 // loop_header_branch
                  %249 = sbr.rel (%p247) target = $region66
                $region63: #{tpu_custom_call.1} parent=58 // loop_body
                  %v253 = vld [vmem:[%s251] sm:$0xff]
                  %254 = vst [vmem:[%s252] sm:$0xff] %v253
                  %v255 = vld [vmem:[%s251 + $0x10] sm:$0xff]
                  %256 = vst [vmem:[%s252 + $0x8] sm:$0xff] %v255
                  %v257 = vld [vmem:[%s251 + $0x20] sm:$0xff]
                  %258 = vst [vmem:[%s252 + $0x10] sm:$0xff] %v257
                  %v259 = vld [vmem:[%s251 + $0x30] sm:$0xff]
                  %260 = vst [vmem:[%s252 + $0x18] sm:$0xff] %v259
                  %v261 = vld [vmem:[%s251 + $0x40] sm:$0xff]
                  %262 = vst [vmem:[%s252 + $0x20] sm:$0xff] %v261
                  %v263 = vld [vmem:[%s251 + $0x50] sm:$0xff]
                  %264 = vst [vmem:[%s252 + $0x28] sm:$0xff] %v263
                  %v265 = vld [vmem:[%s251 + $0x60] sm:$0xff]
                  %266 = vst [vmem:[%s252 + $0x30] sm:$0xff] %v265
                  %v267 = vld [vmem:[%s251 + $0x70] sm:$0xff]
                  %268 = vst [vmem:[%s252 + $0x38] sm:$0xff] %v267
                $region64: #{tpu_custom_call.1} parent=58 // loop_footer
                  %s250 = sadd.s32 1, %s246
                $region65: #{tpu_custom_call.1} parent=58 // loop_footer_branch
                  %245 = sbr.rel target = $region61
                $region66: #{tpu_custom_call.1} parent=58 // loop_exit
                  _
              $region59: #{tpu_custom_call.1} parent=43 // pred_fallthru
                _
              // Predicated region
              $region67: #{tpu_custom_call.1} parent=43 // pred_check
                _
              $region68: #{tpu_custom_call.1} parent=43 // pred_check_branch
                %270 = sbr.rel target = $region70
              $region69: #{tpu_custom_call.1} parent=43 // pred_region
                _
              $region70: #{tpu_custom_call.1} parent=43 // pred_fallthru
                _
            $region44: #{tpu_custom_call.1} parent=39 // pred_fallthru
              _
            // Predicated region
            $region45: #{tpu_custom_call.1} parent=39 // pred_check
              _
            $region46: #{tpu_custom_call.1} parent=39 // pred_check_branch
              %217 = sbr.rel target = $region48
            $region47: #{tpu_custom_call.1} parent=39 // pred_region
              loop: start=0, step=1, limit=1
              $region49: #{tpu_custom_call.1} parent=47 // loop_pre_header
                _
              $region50: #{tpu_custom_call.1} parent=47 // loop_header
                %s220 = sphi 0, %s224
                %p221 = scmp.ge.s32.totalorder %s220, 1
                %s225 = sphi %s211, %s211
                %s226 = sphi %s209, %s209
              $region51: #{tpu_custom_call.1} parent=47 // loop_header_branch
                %223 = sbr.rel (%p221) target = $region55
              $region52: #{tpu_custom_call.1} parent=47 // loop_body
                %v227 = vld [vmem:[%s225] sm:$0xff]
                %228 = vst [vmem:[%s226] sm:$0xff] %v227
                %v229 = vld [vmem:[%s225 + $0x10] sm:$0xff]
                %230 = vst [vmem:[%s226 + $0x8] sm:$0xff] %v229
                %v231 = vld [vmem:[%s225 + $0x20] sm:$0xff]
                %232 = vst [vmem:[%s226 + $0x10] sm:$0xff] %v231
                %v233 = vld [vmem:[%s225 + $0x30] sm:$0xff]
                %234 = vst [vmem:[%s226 + $0x18] sm:$0xff] %v233
                %v235 = vld [vmem:[%s225 + $0x40] sm:$0xff]
                %236 = vst [vmem:[%s226 + $0x20] sm:$0xff] %v235
                %v237 = vld [vmem:[%s225 + $0x50] sm:$0xff]
                %238 = vst [vmem:[%s226 + $0x28] sm:$0xff] %v237
                %v239 = vld [vmem:[%s225 + $0x60] sm:$0xff]
                %240 = vst [vmem:[%s226 + $0x30] sm:$0xff] %v239
                %v241 = vld [vmem:[%s225 + $0x70] sm:$0xff]
                %242 = vst [vmem:[%s226 + $0x38] sm:$0xff] %v241
              $region53: #{tpu_custom_call.1} parent=47 // loop_footer
                %s224 = sadd.s32 1, %s220
              $region54: #{tpu_custom_call.1} parent=47 // loop_footer_branch
                %219 = sbr.rel target = $region50
              $region55: #{tpu_custom_call.1} parent=47 // loop_exit
                _
            $region48: #{tpu_custom_call.1} parent=39 // pred_fallthru
              _
          $region40: #{tpu_custom_call.1} parent=35 // pred_fallthru
            _
          %271 = vnop
        $region36: #{tpu_custom_call.1} parent=31 // pred_fallthru
          _
      $region32: #{tpu_custom_call.1} parent=5 // pred_fallthru
        _
      %p272 = scmp.le.s32.totalorder 1, %s16
      %p273 = scmp.lt.s32.totalorder %s16, 3
      %p274 = pnand %p272, %p273
      %p275 = pneg %p274
      // Predicated region
      $region71: #{tpu_custom_call.1} parent=5 // pred_check
        _
      $region72: #{tpu_custom_call.1} parent=5 // pred_check_branch
        %277 = sbr.rel (%p274) target = $region74
      $region73: #{tpu_custom_call.1} parent=5 // pred_region
        %s278 = ssub.s32 %s16, 1
        // Predicated region
        $region75: #{tpu_custom_call.1} parent=73 // pred_check
          %p279 = pneg %p37
        $region76: #{tpu_custom_call.1} parent=73 // pred_check_branch
          %281 = sbr.rel (%p279) target = $region78
        $region77: #{tpu_custom_call.1} parent=73 // pred_region
          %282 = dma.done [#allocation3], 1024
        $region78: #{tpu_custom_call.1} parent=73 // pred_fallthru
          _
        // Predicated region
        $region79: #{tpu_custom_call.1} parent=73 // pred_check
          %p283 = pneg %p79
        $region80: #{tpu_custom_call.1} parent=73 // pred_check_branch
          %285 = sbr.rel (%p283) target = $region82
        $region81: #{tpu_custom_call.1} parent=73 // pred_region
          %286 = dma.done [#allocation6], 1024
        $region82: #{tpu_custom_call.1} parent=73 // pred_fallthru
          _
        %s287 = sand.u32 %s113, 1
        %s288 = sand.u32 %s113, 1
        %s289 = smul.addr %s288, 64
        %s290 = scalar_lea.vmem [#allocation7], %s289
        // Predicated region
        $region83: #{tpu_custom_call.1} parent=73 // pred_check
          %p291 = pneg %p126
        $region84: #{tpu_custom_call.1} parent=73 // pred_check_branch
          %293 = sbr.rel (%p291) target = $region86
        $region85: #{tpu_custom_call.1} parent=73 // pred_region
          _
        $region86: #{tpu_custom_call.1} parent=73 // pred_fallthru
          _
        %p294 = pneg %p37
        %p295 = pneg %p34
        %p296 = pneg %p58
        %p297 = pneg %p55
        %p298 = pneg %p79
        %p299 = pneg %p76
        %p300 = pneg %p100
        %p301 = pneg %p97
        %s302 = sand.u32 %s113, 1
        %s303 = sand.u32 %s113, 1
        %s304 = smul.addr %s303, 64
        %s305 = scalar_lea.vmem [#allocation7], %s304
        %p306 = pneg %p126
        %p307 = pneg %p123
        %p308 = pneg %p152
        %p309 = pneg %p149
        %s310 = sand.u32 %s139, 1
        %s311 = scalar_lea.sflag [#allocation4], %s310
        %s312 = sand.u32 %s139, 1
        %s313 = smul.addr %s312, 64
        %s314 = scalar_lea.vmem [#allocation8], %s313
        %v315 = vld [vmem:[%s290] sm:$0xff]
        %v316 = vld [vmem:[%s290 + $0x8] sm:$0xff]
        %v317 = vld [vmem:[%s290 + $0x10] sm:$0xff]
        %v318 = vld [vmem:[%s290 + $0x18] sm:$0xff]
        %v319 = vld [vmem:[%s290 + $0x20] sm:$0xff]
        %v320 = vld [vmem:[%s290 + $0x28] sm:$0xff]
        %v321 = vld [vmem:[%s290 + $0x30] sm:$0xff]
        %v322 = vld [vmem:[%s290 + $0x38] sm:$0xff]
        %v323 = vld [vmem:[#allocation2] sm:$0xff]
        %v324 = vld [vmem:[#allocation2 + $0x8] sm:$0xff]
        %v325 = vld [vmem:[#allocation2 + $0x10] sm:$0xff]
        %v326 = vld [vmem:[#allocation2 + $0x18] sm:$0xff]
        %v327 = vld [vmem:[#allocation2 + $0x20] sm:$0xff]
        %v328 = vld [vmem:[#allocation2 + $0x28] sm:$0xff]
        %v329 = vld [vmem:[#allocation2 + $0x30] sm:$0xff]
        %v330 = vld [vmem:[#allocation2 + $0x38] sm:$0xff]
        %v331 = vld [vmem:[%s1] sm:$0xff]
        %v332 = vld [vmem:[%s1 + $0x8] sm:$0xff]
        %v333 = vld [vmem:[%s1 + $0x10] sm:$0xff]
        %v334 = vld [vmem:[%s1 + $0x18] sm:$0xff]
        %v335 = vld [vmem:[%s1 + $0x20] sm:$0xff]
        %v336 = vld [vmem:[%s1 + $0x28] sm:$0xff]
        %v337 = vld [vmem:[%s1 + $0x30] sm:$0xff]
        %v338 = vld [vmem:[%s1 + $0x38] sm:$0xff]
        %340 = vset.pattern.permute.xlu0 0
        %341 = vperm.xlu0 %340, %v331
        %v342 = vpop.permute.xlu0 %341
        %345 = vset.pattern.permute.xlu0 0
        %346 = vperm.xlu0 %345, %v332
        %v347 = vpop.permute.xlu0 %346
        %350 = vset.pattern.permute.xlu0 0
        %351 = vperm.xlu0 %350, %v333
        %v352 = vpop.permute.xlu0 %351
        %355 = vset.pattern.permute.xlu0 0
        %356 = vperm.xlu0 %355, %v334
        %v357 = vpop.permute.xlu0 %356
        %360 = vset.pattern.permute.xlu0 0
        %361 = vperm.xlu0 %360, %v335
        %v362 = vpop.permute.xlu0 %361
        %365 = vset.pattern.permute.xlu0 0
        %366 = vperm.xlu0 %365, %v336
        %v367 = vpop.permute.xlu0 %366
        %370 = vset.pattern.permute.xlu0 0
        %371 = vperm.xlu0 %370, %v337
        %v372 = vpop.permute.xlu0 %371
        %375 = vset.pattern.permute.xlu0 0
        %376 = vperm.xlu0 %375, %v338
        %v377 = vpop.permute.xlu0 %376
        %vm379 = vcmask 523264
        %v381 = vsel %vm379, %v323, 0
        %v384 = vsel %vm379, %v324, 0
        %v387 = vsel %vm379, %v325, 0
        %v390 = vsel %vm379, %v326, 0
        %v393 = vsel %vm379, %v327, 0
        %v396 = vsel %vm379, %v328, 0
        %v399 = vsel %vm379, %v329, 0
        %v402 = vsel %vm379, %v330, 0
        %404 = vmatprep.subr.mxu0 0.0
        %v405 = vand.u32 %v315, 4294901760
        %406 = vmatpush1.msra.mxu0 %v405
        %407 = vmatprep.subr.mxu0 0.0
        %v408 = vand.u32 %v316, 4294901760
        %409 = vmatpush1.msra.mxu0 %v408
        %410 = vmatprep.subr.mxu0 0.0
        %v411 = vand.u32 %v317, 4294901760
        %412 = vmatpush1.msra.mxu0 %v411
        %413 = vmatprep.subr.mxu0 0.0
        %v414 = vand.u32 %v318, 4294901760
        %415 = vmatpush1.msra.mxu0 %v414
        %416 = vmatprep.subr.mxu0 0.0
        %v417 = vand.u32 %v319, 4294901760
        %418 = vmatpush1.msra.mxu0 %v417
        %419 = vmatprep.subr.mxu0 0.0
        %v420 = vand.u32 %v320, 4294901760
        %421 = vmatpush1.msra.mxu0 %v420
        %422 = vmatprep.subr.mxu0 0.0
        %v423 = vand.u32 %v321, 4294901760
        %424 = vmatpush1.msra.mxu0 %v423
        %425 = vmatprep.subr.mxu0 0.0
        %v426 = vand.u32 %v322, 4294901760
        %427 = vmatpush1.msra.mxu0 %v426
        %428 = vmatprep.subr.mxu0 0.0
        %429 = vmatpush1.msra.mxu0 0.0
        %430 = vmatprep.subr.mxu0 0.0
        %431 = vmatpush1.msra.mxu0 0.0
        %432 = vmatprep.subr.mxu0 0.0
        %433 = vmatpush1.msra.mxu0 0.0
        %434 = vmatprep.subr.mxu0 0.0
        %435 = vmatpush1.msra.mxu0 0.0
        %436 = vmatprep.subr.mxu0 0.0
        %437 = vmatpush1.msra.mxu0 0.0
        %438 = vmatprep.subr.mxu0 0.0
        %439 = vmatpush1.msra.mxu0 0.0
        %440 = vmatprep.subr.mxu0 0.0
        %441 = vmatpush1.msra.mxu0 0.0
        %442 = vmatprep.subr.mxu0 0.0
        %443 = vmatpush1.msra.mxu0 0.0
        %444 = vmatprep.subr.mxu0 0.0
        %445 = vmatpush1.msra.mxu0 0.0
        %446 = vmatprep.subr.mxu0 0.0
        %447 = vmatpush1.msra.mxu0 0.0
        %448 = vmatprep.subr.mxu0 0.0
        %449 = vmatpush1.msra.mxu0 0.0
        %450 = vmatprep.subr.mxu0 0.0
        %451 = vmatpush1.msra.mxu0 0.0
        %452 = vmatprep.subr.mxu0 0.0
        %453 = vmatpush1.msra.mxu0 0.0
        %454 = vmatprep.subr.mxu0 0.0
        %455 = vmatpush1.msra.mxu0 0.0
        %456 = vmatprep.subr.mxu0 0.0
        %457 = vmatpush1.msra.mxu0 0.0
        %458 = vmatprep.subr.mxu0 0.0
        %459 = vmatpush1.msra.mxu0 0.0
        %460 = vmatprep.subr.mxu0 0.0
        %461 = vmatpush1.msra.mxu0 0.0
        %462 = vmatprep.subr.mxu0 0.0
        %463 = vmatpush1.msra.mxu0 0.0
        %464 = vmatprep.subr.mxu0 0.0
        %465 = vmatpush1.msra.mxu0 0.0
        %466 = vmatprep.subr.mxu0 0.0
        %467 = vmatpush1.msra.mxu0 0.0
        %468 = vmatprep.subr.mxu0 0.0
        %469 = vmatpush1.msra.mxu0 0.0
        %470 = vmatprep.subr.mxu0 0.0
        %471 = vmatpush1.msra.mxu0 0.0
        %472 = vmatprep.subr.mxu0 0.0
        %473 = vmatpush1.msra.mxu0 0.0
        %474 = vmatprep.subr.mxu0 0.0
        %475 = vmatpush1.msra.mxu0 0.0
        %476 = vmatprep.mubr.f32.mxu0 0.0
        %v477 = vand.u32 %v381, 4294901760
        %v478 = vsub.f32 %v381, %v477
        %v479 = vand.u32 %v478, 4294901760
        %v480 = vsub.f32 %v478, %v479
        %v481 = vand.u32 %v480, 4294901760
        %482 = vmatmul.mubr.f32.gmra.mrb[0].mxu0 %v481
        %v483 = vpop.f32.mrb[0].mxu0
        %v484 = vadd.f32 %v342, %v483
        %v485 = vpop.f32.mrb[0].mxu0
        %486 = vmatprep.mubr.f32.mxu0 0.0
        %v487 = vand.u32 %v384, 4294901760
        %v488 = vsub.f32 %v384, %v487
        %v489 = vand.u32 %v488, 4294901760
        %v490 = vsub.f32 %v488, %v489
        %v491 = vand.u32 %v490, 4294901760
        %492 = vmatmul.mubr.f32.gmra.mrb[0].mxu0 %v491
        %v493 = vpop.f32.mrb[0].mxu0
        %v494 = vadd.f32 %v347, %v493
        %v495 = vpop.f32.mrb[0].mxu0
        %496 = vmatprep.mubr.f32.mxu0 0.0
        %v497 = vand.u32 %v387, 4294901760
        %v498 = vsub.f32 %v387, %v497
        %v499 = vand.u32 %v498, 4294901760
        %v500 = vsub.f32 %v498, %v499
        %v501 = vand.u32 %v500, 4294901760
        %502 = vmatmul.mubr.f32.gmra.mrb[0].mxu0 %v501
        %v503 = vpop.f32.mrb[0].mxu0
        %v504 = vadd.f32 %v352, %v503
        %v505 = vpop.f32.mrb[0].mxu0
        %506 = vmatprep.mubr.f32.mxu0 0.0
        %v507 = vand.u32 %v390, 4294901760
        %v508 = vsub.f32 %v390, %v507
        %v509 = vand.u32 %v508, 4294901760
        %v510 = vsub.f32 %v508, %v509
        %v511 = vand.u32 %v510, 4294901760
        %512 = vmatmul.mubr.f32.gmra.mrb[0].mxu0 %v511
        %v513 = vpop.f32.mrb[0].mxu0
        %v514 = vadd.f32 %v357, %v513
        %v515 = vpop.f32.mrb[0].mxu0
        %516 = vmatprep.mubr.f32.mxu0 0.0
        %v517 = vand.u32 %v393, 4294901760
        %v518 = vsub.f32 %v393, %v517
        %v519 = vand.u32 %v518, 4294901760
        %v520 = vsub.f32 %v518, %v519
        %v521 = vand.u32 %v520, 4294901760
        %522 = vmatmul.mubr.f32.gmra.mrb[0].mxu0 %v521
        %v523 = vpop.f32.mrb[0].mxu0
        %v524 = vadd.f32 %v362, %v523
        %v525 = vpop.f32.mrb[0].mxu0
        %526 = vmatprep.mubr.f32.mxu0 0.0
        %v527 = vand.u32 %v396, 4294901760
        %v528 = vsub.f32 %v396, %v527
        %v529 = vand.u32 %v528, 4294901760
        %v530 = vsub.f32 %v528, %v529
        %v531 = vand.u32 %v530, 4294901760
        %532 = vmatmul.mubr.f32.gmra.mrb[0].mxu0 %v531
        %v533 = vpop.f32.mrb[0].mxu0
        %v534 = vadd.f32 %v367, %v533
        %v535 = vpop.f32.mrb[0].mxu0
        %536 = vmatprep.mubr.f32.mxu0 0.0
        %v537 = vand.u32 %v399, 4294901760
        %v538 = vsub.f32 %v399, %v537
        %v539 = vand.u32 %v538, 4294901760
        %v540 = vsub.f32 %v538, %v539
        %v541 = vand.u32 %v540, 4294901760
        %542 = vmatmul.mubr.f32.gmra.mrb[0].mxu0 %v541
        %v543 = vpop.f32.mrb[0].mxu0
        %v544 = vadd.f32 %v372, %v543
        %v545 = vpop.f32.mrb[0].mxu0
        %546 = vmatprep.mubr.f32.mxu0 0.0
        %v547 = vand.u32 %v402, 4294901760
        %v548 = vsub.f32 %v402, %v547
        %v549 = vand.u32 %v548, 4294901760
        %v550 = vsub.f32 %v548, %v549
        %v551 = vand.u32 %v550, 4294901760
        %552 = vmatmul.mubr.f32.gmra.mrb[0].mxu0 %v551
        %v553 = vpop.f32.mrb[0].mxu0
        %v554 = vadd.f32 %v377, %v553
        %v555 = vpop.f32.mrb[0].mxu0
        %556 = vdwg.mxu0
        %557 = vmatprep.subr.mxu0 0.0
        %v558 = vand.u32 %v315, 4294901760
        %v559 = vsub.f32 %v315, %v558
        %v560 = vand.u32 %v559, 4294901760
        %v561 = vsub.f32 %v559, %v560
        %v562 = vand.u32 %v561, 4294901760
        %563 = vmatpush1.msra.mxu0 %v562
        %564 = vmatprep.subr.mxu0 0.0
        %v565 = vand.u32 %v316, 4294901760
        %v566 = vsub.f32 %v316, %v565
        %v567 = vand.u32 %v566, 4294901760
        %v568 = vsub.f32 %v566, %v567
        %v569 = vand.u32 %v568, 4294901760
        %570 = vmatpush1.msra.mxu0 %v569
        %571 = vmatprep.subr.mxu0 0.0
        %v572 = vand.u32 %v317, 4294901760
        %v573 = vsub.f32 %v317, %v572
        %v574 = vand.u32 %v573, 4294901760
        %v575 = vsub.f32 %v573, %v574
        %v576 = vand.u32 %v575, 4294901760
        %577 = vmatpush1.msra.mxu0 %v576
        %578 = vmatprep.subr.mxu0 0.0
        %v579 = vand.u32 %v318, 4294901760
        %v580 = vsub.f32 %v318, %v579
        %v581 = vand.u32 %v580, 4294901760
        %v582 = vsub.f32 %v580, %v581
        %v583 = vand.u32 %v582, 4294901760
        %584 = vmatpush1.msra.mxu0 %v583
        %585 = vmatprep.subr.mxu0 0.0
        %v586 = vand.u32 %v319, 4294901760
        %v587 = vsub.f32 %v319, %v586
        %v588 = vand.u32 %v587, 4294901760
        %v589 = vsub.f32 %v587, %v588
        %v590 = vand.u32 %v589, 4294901760
        %591 = vmatpush1.msra.mxu0 %v590
        %592 = vmatprep.subr.mxu0 0.0
        %v593 = vand.u32 %v320, 4294901760
        %v594 = vsub.f32 %v320, %v593
        %v595 = vand.u32 %v594, 4294901760
        %v596 = vsub.f32 %v594, %v595
        %v597 = vand.u32 %v596, 4294901760
        %598 = vmatpush1.msra.mxu0 %v597
        %599 = vmatprep.subr.mxu0 0.0
        %v600 = vand.u32 %v321, 4294901760
        %v601 = vsub.f32 %v321, %v600
        %v602 = vand.u32 %v601, 4294901760
        %v603 = vsub.f32 %v601, %v602
        %v604 = vand.u32 %v603, 4294901760
        %605 = vmatpush1.msra.mxu0 %v604
        %606 = vmatprep.subr.mxu0 0.0
        %v607 = vand.u32 %v322, 4294901760
        %v608 = vsub.f32 %v322, %v607
        %v609 = vand.u32 %v608, 4294901760
        %v610 = vsub.f32 %v608, %v609
        %v611 = vand.u32 %v610, 4294901760
        %612 = vmatpush1.msra.mxu0 %v611
        %613 = vmatprep.subr.mxu0 0.0
        %614 = vmatpush1.msra.mxu0 0.0
        %615 = vmatprep.subr.mxu0 0.0
        %616 = vmatpush1.msra.mxu0 0.0
        %617 = vmatprep.subr.mxu0 0.0
        %618 = vmatpush1.msra.mxu0 0.0
        %619 = vmatprep.subr.mxu0 0.0
        %620 = vmatpush1.msra.mxu0 0.0
        %621 = vmatprep.subr.mxu0 0.0
        %622 = vmatpush1.msra.mxu0 0.0
        %623 = vmatprep.subr.mxu0 0.0
        %624 = vmatpush1.msra.mxu0 0.0
        %625 = vmatprep.subr.mxu0 0.0
        %626 = vmatpush1.msra.mxu0 0.0
        %627 = vmatprep.subr.mxu0 0.0
        %628 = vmatpush1.msra.mxu0 0.0
        %629 = vmatprep.subr.mxu0 0.0
        %630 = vmatpush1.msra.mxu0 0.0
        %631 = vmatprep.subr.mxu0 0.0
        %632 = vmatpush1.msra.mxu0 0.0
        %633 = vmatprep.subr.mxu0 0.0
        %634 = vmatpush1.msra.mxu0 0.0
        %635 = vmatprep.subr.mxu0 0.0
        %636 = vmatpush1.msra.mxu0 0.0
        %637 = vmatprep.subr.mxu0 0.0
        %638 = vmatpush1.msra.mxu0 0.0
        %639 = vmatprep.subr.mxu0 0.0
        %640 = vmatpush1.msra.mxu0 0.0
        %641 = vmatprep.subr.mxu0 0.0
        %642 = vmatpush1.msra.mxu0 0.0
        %643 = vmatprep.subr.mxu0 0.0
        %644 = vmatpush1.msra.mxu0 0.0
        %645 = vmatprep.subr.mxu0 0.0
        %646 = vmatpush1.msra.mxu0 0.0
        %647 = vmatprep.subr.mxu0 0.0
        %648 = vmatpush1.msra.mxu0 0.0
        %649 = vmatprep.subr.mxu0 0.0
        %650 = vmatpush1.msra.mxu0 0.0
        %651 = vmatprep.subr.mxu0 0.0
        %652 = vmatpush1.msra.mxu0 0.0
        %653 = vmatprep.subr.mxu0 0.0
        %654 = vmatpush1.msra.mxu0 0.0
        %655 = vmatprep.subr.mxu0 0.0
        %656 = vmatpush1.msra.mxu0 0.0
        %657 = vmatprep.subr.mxu0 0.0
        %658 = vmatpush1.msra.mxu0 0.0
        %659 = vmatprep.subr.mxu0 0.0
        %660 = vmatpush1.msra.mxu0 0.0
        %661 = vmatprep.mubr.f32.mxu0 0.0
        %v662 = vand.u32 %v381, 4294901760
        %663 = vmatmul.mubr.f32.gmra.mrb[0].mxu0 %v662
        %v664 = vpop.f32.mrb[0].mxu0
        %v665 = vadd.f32 %v484, %v664
        %v666 = vpop.f32.mrb[0].mxu0
        %667 = vmatprep.mubr.f32.mxu0 0.0
        %v668 = vand.u32 %v384, 4294901760
        %669 = vmatmul.mubr.f32.gmra.mrb[0].mxu0 %v668
        %v670 = vpop.f32.mrb[0].mxu0
        %v671 = vadd.f32 %v494, %v670
        %v672 = vpop.f32.mrb[0].mxu0
        %673 = vmatprep.mubr.f32.mxu0 0.0
        %v674 = vand.u32 %v387, 4294901760
        %675 = vmatmul.mubr.f32.gmra.mrb[0].mxu0 %v674
        %v676 = vpop.f32.mrb[0].mxu0
        %v677 = vadd.f32 %v504, %v676
        %v678 = vpop.f32.mrb[0].mxu0
        %679 = vmatprep.mubr.f32.mxu0 0.0
        %v680 = vand.u32 %v390, 4294901760
        %681 = vmatmul.mubr.f32.gmra.mrb[0].mxu0 %v680
        %v682 = vpop.f32.mrb[0].mxu0
        %v683 = vadd.f32 %v514, %v682
        %v684 = vpop.f32.mrb[0].mxu0
        %685 = vmatprep.mubr.f32.mxu0 0.0
        %v686 = vand.u32 %v393, 4294901760
        %687 = vmatmul.mubr.f32.gmra.mrb[0].mxu0 %v686
        %v688 = vpop.f32.mrb[0].mxu0
        %v689 = vadd.f32 %v524, %v688
        %v690 = vpop.f32.mrb[0].mxu0
        %691 = vmatprep.mubr.f32.mxu0 0.0
        %v692 = vand.u32 %v396, 4294901760
        %693 = vmatmul.mubr.f32.gmra.mrb[0].mxu0 %v692
        %v694 = vpop.f32.mrb[0].mxu0
        %v695 = vadd.f32 %v534, %v694
        %v696 = vpop.f32.mrb[0].mxu0
        %697 = vmatprep.mubr.f32.mxu0 0.0
        %v698 = vand.u32 %v399, 4294901760
        %699 = vmatmul.mubr.f32.gmra.mrb[0].mxu0 %v698
        %v700 = vpop.f32.mrb[0].mxu0
        %v701 = vadd.f32 %v544, %v700
        %v702 = vpop.f32.mrb[0].mxu0
        %703 = vmatprep.mubr.f32.mxu0 0.0
        %v704 = vand.u32 %v402, 4294901760
        %705 = vmatmul.mubr.f32.gmra.mrb[0].mxu0 %v704
        %v706 = vpop.f32.mrb[0].mxu0
        %v707 = vadd.f32 %v554, %v706
        %v708 = vpop.f32.mrb[0].mxu0
        %709 = vdwg.mxu0
        %710 = vmatprep.subr.mxu0 0.0
        %v711 = vand.u32 %v315, 4294901760
        %v712 = vsub.f32 %v315, %v711
        %713 = vmatpush1.msra.mxu0 %v712
        %714 = vmatprep.subr.mxu0 0.0
        %v715 = vand.u32 %v316, 4294901760
        %v716 = vsub.f32 %v316, %v715
        %717 = vmatpush1.msra.mxu0 %v716
        %718 = vmatprep.subr.mxu0 0.0
        %v719 = vand.u32 %v317, 4294901760
        %v720 = vsub.f32 %v317, %v719
        %721 = vmatpush1.msra.mxu0 %v720
        %722 = vmatprep.subr.mxu0 0.0
        %v723 = vand.u32 %v318, 4294901760
        %v724 = vsub.f32 %v318, %v723
        %725 = vmatpush1.msra.mxu0 %v724
        %726 = vmatprep.subr.mxu0 0.0
        %v727 = vand.u32 %v319, 4294901760
        %v728 = vsub.f32 %v319, %v727
        %729 = vmatpush1.msra.mxu0 %v728
        %730 = vmatprep.subr.mxu0 0.0
        %v731 = vand.u32 %v320, 4294901760
        %v732 = vsub.f32 %v320, %v731
        %733 = vmatpush1.msra.mxu0 %v732
        %734 = vmatprep.subr.mxu0 0.0
        %v735 = vand.u32 %v321, 4294901760
        %v736 = vsub.f32 %v321, %v735
        %737 = vmatpush1.msra.mxu0 %v736
        %738 = vmatprep.subr.mxu0 0.0
        %v739 = vand.u32 %v322, 4294901760
        %v740 = vsub.f32 %v322, %v739
        %741 = vmatpush1.msra.mxu0 %v740
        %742 = vmatprep.subr.mxu0 0.0
        %743 = vmatpush1.msra.mxu0 0.0
        %744 = vmatprep.subr.mxu0 0.0
        %745 = vmatpush1.msra.mxu0 0.0
        %746 = vmatprep.subr.mxu0 0.0
        %747 = vmatpush1.msra.mxu0 0.0
        %748 = vmatprep.subr.mxu0 0.0
        %749 = vmatpush1.msra.mxu0 0.0
        %750 = vmatprep.subr.mxu0 0.0
        %751 = vmatpush1.msra.mxu0 0.0
        %752 = vmatprep.subr.mxu0 0.0
        %753 = vmatpush1.msra.mxu0 0.0
        %754 = vmatprep.subr.mxu0 0.0
        %755 = vmatpush1.msra.mxu0 0.0
        %756 = vmatprep.subr.mxu0 0.0
        %757 = vmatpush1.msra.mxu0 0.0
        %758 = vmatprep.subr.mxu0 0.0
        %759 = vmatpush1.msra.mxu0 0.0
        %760 = vmatprep.subr.mxu0 0.0
        %761 = vmatpush1.msra.mxu0 0.0
        %762 = vmatprep.subr.mxu0 0.0
        %763 = vmatpush1.msra.mxu0 0.0
        %764 = vmatprep.subr.mxu0 0.0
        %765 = vmatpush1.msra.mxu0 0.0
        %766 = vmatprep.subr.mxu0 0.0
        %767 = vmatpush1.msra.mxu0 0.0
        %768 = vmatprep.subr.mxu0 0.0
        %769 = vmatpush1.msra.mxu0 0.0
        %770 = vmatprep.subr.mxu0 0.0
        %771 = vmatpush1.msra.mxu0 0.0
        %772 = vmatprep.subr.mxu0 0.0
        %773 = vmatpush1.msra.mxu0 0.0
        %774 = vmatprep.subr.mxu0 0.0
        %775 = vmatpush1.msra.mxu0 0.0
        %776 = vmatprep.subr.mxu0 0.0
        %777 = vmatpush1.msra.mxu0 0.0
        %778 = vmatprep.subr.mxu0 0.0
        %779 = vmatpush1.msra.mxu0 0.0
        %780 = vmatprep.subr.mxu0 0.0
        %781 = vmatpush1.msra.mxu0 0.0
        %782 = vmatprep.subr.mxu0 0.0
        %783 = vmatpush1.msra.mxu0 0.0
        %784 = vmatprep.subr.mxu0 0.0
        %785 = vmatpush1.msra.mxu0 0.0
        %786 = vmatprep.subr.mxu0 0.0
        %787 = vmatpush1.msra.mxu0 0.0
        %788 = vmatprep.subr.mxu0 0.0
        %789 = vmatpush1.msra.mxu0 0.0
        %790 = vmatprep.mubr.f32.mxu0 0.0
        %v791 = vand.u32 %v381, 4294901760
        %v792 = vsub.f32 %v381, %v791
        %793 = vmatmul.mubr.f32.gmra.mrb[0].mxu0 %v792
        %v794 = vpop.f32.mrb[0].mxu0
        %v795 = vadd.f32 %v665, %v794
        %v796 = vpop.f32.mrb[0].mxu0
        %797 = vmatprep.mubr.f32.mxu0 0.0
        %v798 = vand.u32 %v384, 4294901760
        %v799 = vsub.f32 %v384, %v798
        %800 = vmatmul.mubr.f32.gmra.mrb[0].mxu0 %v799
        %v801 = vpop.f32.mrb[0].mxu0
        %v802 = vadd.f32 %v671, %v801
        %v803 = vpop.f32.mrb[0].mxu0
        %804 = vmatprep.mubr.f32.mxu0 0.0
        %v805 = vand.u32 %v387, 4294901760
        %v806 = vsub.f32 %v387, %v805
        %807 = vmatmul.mubr.f32.gmra.mrb[0].mxu0 %v806
        %v808 = vpop.f32.mrb[0].mxu0
        %v809 = vadd.f32 %v677, %v808
        %v810 = vpop.f32.mrb[0].mxu0
        %811 = vmatprep.mubr.f32.mxu0 0.0
        %v812 = vand.u32 %v390, 4294901760
        %v813 = vsub.f32 %v390, %v812
        %814 = vmatmul.mubr.f32.gmra.mrb[0].mxu0 %v813
        %v815 = vpop.f32.mrb[0].mxu0
        %v816 = vadd.f32 %v683, %v815
        %v817 = vpop.f32.mrb[0].mxu0
        %818 = vmatprep.mubr.f32.mxu0 0.0
        %v819 = vand.u32 %v393, 4294901760
        %v820 = vsub.f32 %v393, %v819
        %821 = vmatmul.mubr.f32.gmra.mrb[0].mxu0 %v820
        %v822 = vpop.f32.mrb[0].mxu0
        %v823 = vadd.f32 %v689, %v822
        %v824 = vpop.f32.mrb[0].mxu0
        %825 = vmatprep.mubr.f32.mxu0 0.0
        %v826 = vand.u32 %v396, 4294901760
        %v827 = vsub.f32 %v396, %v826
        %828 = vmatmul.mubr.f32.gmra.mrb[0].mxu0 %v827
        %v829 = vpop.f32.mrb[0].mxu0
        %v830 = vadd.f32 %v695, %v829
        %v831 = vpop.f32.mrb[0].mxu0
        %832 = vmatprep.mubr.f32.mxu0 0.0
        %v833 = vand.u32 %v399, 4294901760
        %v834 = vsub.f32 %v399, %v833
        %835 = vmatmul.mubr.f32.gmra.mrb[0].mxu0 %v834
        %v836 = vpop.f32.mrb[0].mxu0
        %v837 = vadd.f32 %v701, %v836
        %v838 = vpop.f32.mrb[0].mxu0
        %839 = vmatprep.mubr.f32.mxu0 0.0
        %v840 = vand.u32 %v402, 4294901760
        %v841 = vsub.f32 %v402, %v840
        %842 = vmatmul.mubr.f32.gmra.mrb[0].mxu0 %v841
        %v843 = vpop.f32.mrb[0].mxu0
        %v844 = vadd.f32 %v707, %v843
        %v845 = vpop.f32.mrb[0].mxu0
        %846 = vdwg.mxu0
        %847 = vmatprep.subr.mxu0 0.0
        %v848 = vand.u32 %v315, 4294901760
        %849 = vmatpush1.msra.mxu0 %v848
        %850 = vmatprep.subr.mxu0 0.0
        %v851 = vand.u32 %v316, 4294901760
        %852 = vmatpush1.msra.mxu0 %v851
        %853 = vmatprep.subr.mxu0 0.0
        %v854 = vand.u32 %v317, 4294901760
        %855 = vmatpush1.msra.mxu0 %v854
        %856 = vmatprep.subr.mxu0 0.0
        %v857 = vand.u32 %v318, 4294901760
        %858 = vmatpush1.msra.mxu0 %v857
        %859 = vmatprep.subr.mxu0 0.0
        %v860 = vand.u32 %v319, 4294901760
        %861 = vmatpush1.msra.mxu0 %v860
        %862 = vmatprep.subr.mxu0 0.0
        %v863 = vand.u32 %v320, 4294901760
        %864 = vmatpush1.msra.mxu0 %v863
        %865 = vmatprep.subr.mxu0 0.0
        %v866 = vand.u32 %v321, 4294901760
        %867 = vmatpush1.msra.mxu0 %v866
        %868 = vmatprep.subr.mxu0 0.0
        %v869 = vand.u32 %v322, 4294901760
        %870 = vmatpush1.msra.mxu0 %v869
        %871 = vmatprep.subr.mxu0 0.0
        %872 = vmatpush1.msra.mxu0 0.0
        %873 = vmatprep.subr.mxu0 0.0
        %874 = vmatpush1.msra.mxu0 0.0
        %875 = vmatprep.subr.mxu0 0.0
        %876 = vmatpush1.msra.mxu0 0.0
        %877 = vmatprep.subr.mxu0 0.0
        %878 = vmatpush1.msra.mxu0 0.0
        %879 = vmatprep.subr.mxu0 0.0
        %880 = vmatpush1.msra.mxu0 0.0
        %881 = vmatprep.subr.mxu0 0.0
        %882 = vmatpush1.msra.mxu0 0.0
        %883 = vmatprep.subr.mxu0 0.0
        %884 = vmatpush1.msra.mxu0 0.0
        %885 = vmatprep.subr.mxu0 0.0
        %886 = vmatpush1.msra.mxu0 0.0
        %887 = vmatprep.subr.mxu0 0.0
        %888 = vmatpush1.msra.mxu0 0.0
        %889 = vmatprep.subr.mxu0 0.0
        %890 = vmatpush1.msra.mxu0 0.0
        %891 = vmatprep.subr.mxu0 0.0
        %892 = vmatpush1.msra.mxu0 0.0
        %893 = vmatprep.subr.mxu0 0.0
        %894 = vmatpush1.msra.mxu0 0.0
        %895 = vmatprep.subr.mxu0 0.0
        %896 = vmatpush1.msra.mxu0 0.0
        %897 = vmatprep.subr.mxu0 0.0
        %898 = vmatpush1.msra.mxu0 0.0
        %899 = vmatprep.subr.mxu0 0.0
        %900 = vmatpush1.msra.mxu0 0.0
        %901 = vmatprep.subr.mxu0 0.0
        %902 = vmatpush1.msra.mxu0 0.0
        %903 = vmatprep.subr.mxu0 0.0
        %904 = vmatpush1.msra.mxu0 0.0
        %905 = vmatprep.subr.mxu0 0.0
        %906 = vmatpush1.msra.mxu0 0.0
        %907 = vmatprep.subr.mxu0 0.0
        %908 = vmatpush1.msra.mxu0 0.0
        %909 = vmatprep.subr.mxu0 0.0
        %910 = vmatpush1.msra.mxu0 0.0
        %911 = vmatprep.subr.mxu0 0.0
        %912 = vmatpush1.msra.mxu0 0.0
        %913 = vmatprep.subr.mxu0 0.0
        %914 = vmatpush1.msra.mxu0 0.0
        %915 = vmatprep.subr.mxu0 0.0
        %916 = vmatpush1.msra.mxu0 0.0
        %917 = vmatprep.subr.mxu0 0.0
        %918 = vmatpush1.msra.mxu0 0.0
        %919 = vmatprep.mubr.f32.mxu0 0.0
        %v920 = vand.u32 %v381, 4294901760
        %v921 = vsub.f32 %v381, %v920
        %v922 = vand.u32 %v921, 4294901760
        %923 = vmatmul.mubr.f32.gmra.mrb[0].mxu0 %v922
        %v924 = vpop.f32.mrb[0].mxu0
        %v925 = vadd.f32 %v795, %v924
        %v926 = vpop.f32.mrb[0].mxu0
        %927 = vmatprep.mubr.f32.mxu0 0.0
        %v928 = vand.u32 %v384, 4294901760
        %v929 = vsub.f32 %v384, %v928
        %v930 = vand.u32 %v929, 4294901760
        %931 = vmatmul.mubr.f32.gmra.mrb[0].mxu0 %v930
        %v932 = vpop.f32.mrb[0].mxu0
        %v933 = vadd.f32 %v802, %v932
        %v934 = vpop.f32.mrb[0].mxu0
        %935 = vmatprep.mubr.f32.mxu0 0.0
        %v936 = vand.u32 %v387, 4294901760
        %v937 = vsub.f32 %v387, %v936
        %v938 = vand.u32 %v937, 4294901760
        %939 = vmatmul.mubr.f32.gmra.mrb[0].mxu0 %v938
        %v940 = vpop.f32.mrb[0].mxu0
        %v941 = vadd.f32 %v809, %v940
        %v942 = vpop.f32.mrb[0].mxu0
        %943 = vmatprep.mubr.f32.mxu0 0.0
        %v944 = vand.u32 %v390, 4294901760
        %v945 = vsub.f32 %v390, %v944
        %v946 = vand.u32 %v945, 4294901760
        %947 = vmatmul.mubr.f32.gmra.mrb[0].mxu0 %v946
        %v948 = vpop.f32.mrb[0].mxu0
        %v949 = vadd.f32 %v816, %v948
        %v950 = vpop.f32.mrb[0].mxu0
        %951 = vmatprep.mubr.f32.mxu0 0.0
        %v952 = vand.u32 %v393, 4294901760
        %v953 = vsub.f32 %v393, %v952
        %v954 = vand.u32 %v953, 4294901760
        %955 = vmatmul.mubr.f32.gmra.mrb[0].mxu0 %v954
        %v956 = vpop.f32.mrb[0].mxu0
        %v957 = vadd.f32 %v823, %v956
        %v958 = vpop.f32.mrb[0].mxu0
        %959 = vmatprep.mubr.f32.mxu0 0.0
        %v960 = vand.u32 %v396, 4294901760
        %v961 = vsub.f32 %v396, %v960
        %v962 = vand.u32 %v961, 4294901760
        %963 = vmatmul.mubr.f32.gmra.mrb[0].mxu0 %v962
        %v964 = vpop.f32.mrb[0].mxu0
        %v965 = vadd.f32 %v830, %v964
        %v966 = vpop.f32.mrb[0].mxu0
        %967 = vmatprep.mubr.f32.mxu0 0.0
        %v968 = vand.u32 %v399, 4294901760
        %v969 = vsub.f32 %v399, %v968
        %v970 = vand.u32 %v969, 4294901760
        %971 = vmatmul.mubr.f32.gmra.mrb[0].mxu0 %v970
        %v972 = vpop.f32.mrb[0].mxu0
        %v973 = vadd.f32 %v837, %v972
        %v974 = vpop.f32.mrb[0].mxu0
        %975 = vmatprep.mubr.f32.mxu0 0.0
        %v976 = vand.u32 %v402, 4294901760
        %v977 = vsub.f32 %v402, %v976
        %v978 = vand.u32 %v977, 4294901760
        %979 = vmatmul.mubr.f32.gmra.mrb[0].mxu0 %v978
        %v980 = vpop.f32.mrb[0].mxu0
        %v981 = vadd.f32 %v844, %v980
        %v982 = vpop.f32.mrb[0].mxu0
        %983 = vdwg.mxu0
        %984 = vmatprep.subr.mxu0 0.0
        %v985 = vand.u32 %v315, 4294901760
        %v986 = vsub.f32 %v315, %v985
        %v987 = vand.u32 %v986, 4294901760
        %988 = vmatpush1.msra.mxu0 %v987
        %989 = vmatprep.subr.mxu0 0.0
        %v990 = vand.u32 %v316, 4294901760
        %v991 = vsub.f32 %v316, %v990
        %v992 = vand.u32 %v991, 4294901760
        %993 = vmatpush1.msra.mxu0 %v992
        %994 = vmatprep.subr.mxu0 0.0
        %v995 = vand.u32 %v317, 4294901760
        %v996 = vsub.f32 %v317, %v995
        %v997 = vand.u32 %v996, 4294901760
        %998 = vmatpush1.msra.mxu0 %v997
        %999 = vmatprep.subr.mxu0 0.0
        %v1000 = vand.u32 %v318, 4294901760
        %v1001 = vsub.f32 %v318, %v1000
        %v1002 = vand.u32 %v1001, 4294901760
        %1003 = vmatpush1.msra.mxu0 %v1002
        %1004 = vmatprep.subr.mxu0 0.0
        %v1005 = vand.u32 %v319, 4294901760
        %v1006 = vsub.f32 %v319, %v1005
        %v1007 = vand.u32 %v1006, 4294901760
        %1008 = vmatpush1.msra.mxu0 %v1007
        %1009 = vmatprep.subr.mxu0 0.0
        %v1010 = vand.u32 %v320, 4294901760
        %v1011 = vsub.f32 %v320, %v1010
        %v1012 = vand.u32 %v1011, 4294901760
        %1013 = vmatpush1.msra.mxu0 %v1012
        %1014 = vmatprep.subr.mxu0 0.0
        %v1015 = vand.u32 %v321, 4294901760
        %v1016 = vsub.f32 %v321, %v1015
        %v1017 = vand.u32 %v1016, 4294901760
        %1018 = vmatpush1.msra.mxu0 %v1017
        %1019 = vmatprep.subr.mxu0 0.0
        %v1020 = vand.u32 %v322, 4294901760
        %v1021 = vsub.f32 %v322, %v1020
        %v1022 = vand.u32 %v1021, 4294901760
        %1023 = vmatpush1.msra.mxu0 %v1022
        %1024 = vmatprep.subr.mxu0 0.0
        %1025 = vmatpush1.msra.mxu0 0.0
        %1026 = vmatprep.subr.mxu0 0.0
        %1027 = vmatpush1.msra.mxu0 0.0
        %1028 = vmatprep.subr.mxu0 0.0
        %1029 = vmatpush1.msra.mxu0 0.0
        %1030 = vmatprep.subr.mxu0 0.0
        %1031 = vmatpush1.msra.mxu0 0.0
        %1032 = vmatprep.subr.mxu0 0.0
        %1033 = vmatpush1.msra.mxu0 0.0
        %1034 = vmatprep.subr.mxu0 0.0
        %1035 = vmatpush1.msra.mxu0 0.0
        %1036 = vmatprep.subr.mxu0 0.0
        %1037 = vmatpush1.msra.mxu0 0.0
        %1038 = vmatprep.subr.mxu0 0.0
        %1039 = vmatpush1.msra.mxu0 0.0
        %1040 = vmatprep.subr.mxu0 0.0
        %1041 = vmatpush1.msra.mxu0 0.0
        %1042 = vmatprep.subr.mxu0 0.0
        %1043 = vmatpush1.msra.mxu0 0.0
        %1044 = vmatprep.subr.mxu0 0.0
        %1045 = vmatpush1.msra.mxu0 0.0
        %1046 = vmatprep.subr.mxu0 0.0
        %1047 = vmatpush1.msra.mxu0 0.0
        %1048 = vmatprep.subr.mxu0 0.0
        %1049 = vmatpush1.msra.mxu0 0.0
        %1050 = vmatprep.subr.mxu0 0.0
        %1051 = vmatpush1.msra.mxu0 0.0
        %1052 = vmatprep.subr.mxu0 0.0
        %1053 = vmatpush1.msra.mxu0 0.0
        %1054 = vmatprep.subr.mxu0 0.0
        %1055 = vmatpush1.msra.mxu0 0.0
        %1056 = vmatprep.subr.mxu0 0.0
        %1057 = vmatpush1.msra.mxu0 0.0
        %1058 = vmatprep.subr.mxu0 0.0
        %1059 = vmatpush1.msra.mxu0 0.0
        %1060 = vmatprep.subr.mxu0 0.0
        %1061 = vmatpush1.msra.mxu0 0.0
        %1062 = vmatprep.subr.mxu0 0.0
        %1063 = vmatpush1.msra.mxu0 0.0
        %1064 = vmatprep.subr.mxu0 0.0
        %1065 = vmatpush1.msra.mxu0 0.0
        %1066 = vmatprep.subr.mxu0 0.0
        %1067 = vmatpush1.msra.mxu0 0.0
        %1068 = vmatprep.subr.mxu0 0.0
        %1069 = vmatpush1.msra.mxu0 0.0
        %1070 = vmatprep.subr.mxu0 0.0
        %1071 = vmatpush1.msra.mxu0 0.0
        %1072 = vmatprep.mubr.f32.mxu0 0.0
        %v1073 = vand.u32 %v381, 4294901760
        %1074 = vmatmul.mubr.f32.gmra.mrb[0].mxu0 %v1073
        %v1075 = vpop.f32.mrb[0].mxu0
        %v1076 = vadd.f32 %v925, %v1075
        %v1077 = vpop.f32.mrb[0].mxu0
        %1078 = vmatprep.mubr.f32.mxu0 0.0
        %v1079 = vand.u32 %v384, 4294901760
        %1080 = vmatmul.mubr.f32.gmra.mrb[0].mxu0 %v1079
        %v1081 = vpop.f32.mrb[0].mxu0
        %v1082 = vadd.f32 %v933, %v1081
        %v1083 = vpop.f32.mrb[0].mxu0
        %1084 = vmatprep.mubr.f32.mxu0 0.0
        %v1085 = vand.u32 %v387, 4294901760
        %1086 = vmatmul.mubr.f32.gmra.mrb[0].mxu0 %v1085
        %v1087 = vpop.f32.mrb[0].mxu0
        %v1088 = vadd.f32 %v941, %v1087
        %v1089 = vpop.f32.mrb[0].mxu0
        %1090 = vmatprep.mubr.f32.mxu0 0.0
        %v1091 = vand.u32 %v390, 4294901760
        %1092 = vmatmul.mubr.f32.gmra.mrb[0].mxu0 %v1091
        %v1093 = vpop.f32.mrb[0].mxu0
        %v1094 = vadd.f32 %v949, %v1093
        %v1095 = vpop.f32.mrb[0].mxu0
        %1096 = vmatprep.mubr.f32.mxu0 0.0
        %v1097 = vand.u32 %v393, 4294901760
        %1098 = vmatmul.mubr.f32.gmra.mrb[0].mxu0 %v1097
        %v1099 = vpop.f32.mrb[0].mxu0
        %v1100 = vadd.f32 %v957, %v1099
        %v1101 = vpop.f32.mrb[0].mxu0
        %1102 = vmatprep.mubr.f32.mxu0 0.0
        %v1103 = vand.u32 %v396, 4294901760
        %1104 = vmatmul.mubr.f32.gmra.mrb[0].mxu0 %v1103
        %v1105 = vpop.f32.mrb[0].mxu0
        %v1106 = vadd.f32 %v965, %v1105
        %v1107 = vpop.f32.mrb[0].mxu0
        %1108 = vmatprep.mubr.f32.mxu0 0.0
        %v1109 = vand.u32 %v399, 4294901760
        %1110 = vmatmul.mubr.f32.gmra.mrb[0].mxu0 %v1109
        %v1111 = vpop.f32.mrb[0].mxu0
        %v1112 = vadd.f32 %v973, %v1111
        %v1113 = vpop.f32.mrb[0].mxu0
        %1114 = vmatprep.mubr.f32.mxu0 0.0
        %v1115 = vand.u32 %v402, 4294901760
        %1116 = vmatmul.mubr.f32.gmra.mrb[0].mxu0 %v1115
        %v1117 = vpop.f32.mrb[0].mxu0
        %v1118 = vadd.f32 %v981, %v1117
        %v1119 = vpop.f32.mrb[0].mxu0
        %1120 = vdwg.mxu0
        %1121 = vmatprep.subr.mxu0 0.0
        %v1122 = vand.u32 %v315, 4294901760
        %1123 = vmatpush1.msra.mxu0 %v1122
        %1124 = vmatprep.subr.mxu0 0.0
        %v1125 = vand.u32 %v316, 4294901760
        %1126 = vmatpush1.msra.mxu0 %v1125
        %1127 = vmatprep.subr.mxu0 0.0
        %v1128 = vand.u32 %v317, 4294901760
        %1129 = vmatpush1.msra.mxu0 %v1128
        %1130 = vmatprep.subr.mxu0 0.0
        %v1131 = vand.u32 %v318, 4294901760
        %1132 = vmatpush1.msra.mxu0 %v1131
        %1133 = vmatprep.subr.mxu0 0.0
        %v1134 = vand.u32 %v319, 4294901760
        %1135 = vmatpush1.msra.mxu0 %v1134
        %1136 = vmatprep.subr.mxu0 0.0
        %v1137 = vand.u32 %v320, 4294901760
        %1138 = vmatpush1.msra.mxu0 %v1137
        %1139 = vmatprep.subr.mxu0 0.0
        %v1140 = vand.u32 %v321, 4294901760
        %1141 = vmatpush1.msra.mxu0 %v1140
        %1142 = vmatprep.subr.mxu0 0.0
        %v1143 = vand.u32 %v322, 4294901760
        %1144 = vmatpush1.msra.mxu0 %v1143
        %1145 = vmatprep.subr.mxu0 0.0
        %1146 = vmatpush1.msra.mxu0 0.0
        %1147 = vmatprep.subr.mxu0 0.0
        %1148 = vmatpush1.msra.mxu0 0.0
        %1149 = vmatprep.subr.mxu0 0.0
        %1150 = vmatpush1.msra.mxu0 0.0
        %1151 = vmatprep.subr.mxu0 0.0
        %1152 = vmatpush1.msra.mxu0 0.0
        %1153 = vmatprep.subr.mxu0 0.0
        %1154 = vmatpush1.msra.mxu0 0.0
        %1155 = vmatprep.subr.mxu0 0.0
        %1156 = vmatpush1.msra.mxu0 0.0
        %1157 = vmatprep.subr.mxu0 0.0
        %1158 = vmatpush1.msra.mxu0 0.0
        %1159 = vmatprep.subr.mxu0 0.0
        %1160 = vmatpush1.msra.mxu0 0.0
        %1161 = vmatprep.subr.mxu0 0.0
        %1162 = vmatpush1.msra.mxu0 0.0
        %1163 = vmatprep.subr.mxu0 0.0
        %1164 = vmatpush1.msra.mxu0 0.0
        %1165 = vmatprep.subr.mxu0 0.0
        %1166 = vmatpush1.msra.mxu0 0.0
        %1167 = vmatprep.subr.mxu0 0.0
        %1168 = vmatpush1.msra.mxu0 0.0
        %1169 = vmatprep.subr.mxu0 0.0
        %1170 = vmatpush1.msra.mxu0 0.0
        %1171 = vmatprep.subr.mxu0 0.0
        %1172 = vmatpush1.msra.mxu0 0.0
        %1173 = vmatprep.subr.mxu0 0.0
        %1174 = vmatpush1.msra.mxu0 0.0
        %1175 = vmatprep.subr.mxu0 0.0
        %1176 = vmatpush1.msra.mxu0 0.0
        %1177 = vmatprep.subr.mxu0 0.0
        %1178 = vmatpush1.msra.mxu0 0.0
        %1179 = vmatprep.subr.mxu0 0.0
        %1180 = vmatpush1.msra.mxu0 0.0
        %1181 = vmatprep.subr.mxu0 0.0
        %1182 = vmatpush1.msra.mxu0 0.0
        %1183 = vmatprep.subr.mxu0 0.0
        %1184 = vmatpush1.msra.mxu0 0.0
        %1185 = vmatprep.subr.mxu0 0.0
        %1186 = vmatpush1.msra.mxu0 0.0
        %1187 = vmatprep.subr.mxu0 0.0
        %1188 = vmatpush1.msra.mxu0 0.0
        %1189 = vmatprep.subr.mxu0 0.0
        %1190 = vmatpush1.msra.mxu0 0.0
        %1191 = vmatprep.subr.mxu0 0.0
        %1192 = vmatpush1.msra.mxu0 0.0
        %1193 = vmatprep.mubr.f32.mxu0 0.0
        %v1194 = vand.u32 %v381, 4294901760
        %1195 = vmatmul.mubr.f32.gmra.mrb[0].mxu0 %v1194
        %v1196 = vpop.f32.mrb[0].mxu0
        %v1197 = vadd.f32 %v1076, %v1196
        %v1198 = vpop.f32.mrb[0].mxu0
        %1199 = vmatprep.mubr.f32.mxu0 0.0
        %v1200 = vand.u32 %v384, 4294901760
        %1201 = vmatmul.mubr.f32.gmra.mrb[0].mxu0 %v1200
        %v1202 = vpop.f32.mrb[0].mxu0
        %v1203 = vadd.f32 %v1082, %v1202
        %v1204 = vpop.f32.mrb[0].mxu0
        %1205 = vmatprep.mubr.f32.mxu0 0.0
        %v1206 = vand.u32 %v387, 4294901760
        %1207 = vmatmul.mubr.f32.gmra.mrb[0].mxu0 %v1206
        %v1208 = vpop.f32.mrb[0].mxu0
        %v1209 = vadd.f32 %v1088, %v1208
        %v1210 = vpop.f32.mrb[0].mxu0
        %1211 = vmatprep.mubr.f32.mxu0 0.0
        %v1212 = vand.u32 %v390, 4294901760
        %1213 = vmatmul.mubr.f32.gmra.mrb[0].mxu0 %v1212
        %v1214 = vpop.f32.mrb[0].mxu0
        %v1215 = vadd.f32 %v1094, %v1214
        %v1216 = vpop.f32.mrb[0].mxu0
        %1217 = vmatprep.mubr.f32.mxu0 0.0
        %v1218 = vand.u32 %v393, 4294901760
        %1219 = vmatmul.mubr.f32.gmra.mrb[0].mxu0 %v1218
        %v1220 = vpop.f32.mrb[0].mxu0
        %v1221 = vadd.f32 %v1100, %v1220
        %v1222 = vpop.f32.mrb[0].mxu0
        %1223 = vmatprep.mubr.f32.mxu0 0.0
        %v1224 = vand.u32 %v396, 4294901760
        %1225 = vmatmul.mubr.f32.gmra.mrb[0].mxu0 %v1224
        %v1226 = vpop.f32.mrb[0].mxu0
        %v1227 = vadd.f32 %v1106, %v1226
        %v1228 = vpop.f32.mrb[0].mxu0
        %1229 = vmatprep.mubr.f32.mxu0 0.0
        %v1230 = vand.u32 %v399, 4294901760
        %1231 = vmatmul.mubr.f32.gmra.mrb[0].mxu0 %v1230
        %v1232 = vpop.f32.mrb[0].mxu0
        %v1233 = vadd.f32 %v1112, %v1232
        %v1234 = vpop.f32.mrb[0].mxu0
        %1235 = vmatprep.mubr.f32.mxu0 0.0
        %v1236 = vand.u32 %v402, 4294901760
        %1237 = vmatmul.mubr.f32.gmra.mrb[0].mxu0 %v1236
        %v1238 = vpop.f32.mrb[0].mxu0
        %v1239 = vadd.f32 %v1118, %v1238
        %v1240 = vpop.f32.mrb[0].mxu0
        %1241 = vdwg.mxu0
        %v1242 = vmax.f32 %v1197, 0.0
        %v1243 = vmax.f32 %v1203, 0.0
        %v1244 = vmax.f32 %v1209, 0.0
        %v1245 = vmax.f32 %v1215, 0.0
        %v1246 = vmax.f32 %v1221, 0.0
        %v1247 = vmax.f32 %v1227, 0.0
        %v1248 = vmax.f32 %v1233, 0.0
        %v1249 = vmax.f32 %v1239, 0.0
        %v1250 = vld [vmem:[#allocation5] sm:$0xff]
        %v1251 = vld [vmem:[#allocation5 + $0x8] sm:$0xff]
        %v1252 = vld [vmem:[#allocation5 + $0x10] sm:$0xff]
        %v1253 = vld [vmem:[#allocation5 + $0x18] sm:$0xff]
        %v1254 = vld [vmem:[#allocation5 + $0x20] sm:$0xff]
        %v1255 = vld [vmem:[#allocation5 + $0x28] sm:$0xff]
        %v1256 = vld [vmem:[#allocation5 + $0x30] sm:$0xff]
        %v1257 = vld [vmem:[#allocation5 + $0x38] sm:$0xff]
        %v1258 = vld [vmem:[%s3] sm:$0xff]
        %v1259 = vld [vmem:[%s3 + $0x8] sm:$0xff]
        %v1260 = vld [vmem:[%s3 + $0x10] sm:$0xff]
        %v1261 = vld [vmem:[%s3 + $0x18] sm:$0xff]
        %v1262 = vld [vmem:[%s3 + $0x20] sm:$0xff]
        %v1263 = vld [vmem:[%s3 + $0x28] sm:$0xff]
        %v1264 = vld [vmem:[%s3 + $0x30] sm:$0xff]
        %v1265 = vld [vmem:[%s3 + $0x38] sm:$0xff]
        %1267 = vset.pattern.permute.xlu0 0
        %1268 = vperm.xlu0 %1267, %v1258
        %v1269 = vpop.permute.xlu0 %1268
        %1272 = vset.pattern.permute.xlu0 0
        %1273 = vperm.xlu0 %1272, %v1259
        %v1274 = vpop.permute.xlu0 %1273
        %1277 = vset.pattern.permute.xlu0 0
        %1278 = vperm.xlu0 %1277, %v1260
        %v1279 = vpop.permute.xlu0 %1278
        %1282 = vset.pattern.permute.xlu0 0
        %1283 = vperm.xlu0 %1282, %v1261
        %v1284 = vpop.permute.xlu0 %1283
        %1287 = vset.pattern.permute.xlu0 0
        %1288 = vperm.xlu0 %1287, %v1262
        %v1289 = vpop.permute.xlu0 %1288
        %1292 = vset.pattern.permute.xlu0 0
        %1293 = vperm.xlu0 %1292, %v1263
        %v1294 = vpop.permute.xlu0 %1293
        %1297 = vset.pattern.permute.xlu0 0
        %1298 = vperm.xlu0 %1297, %v1264
        %v1299 = vpop.permute.xlu0 %1298
        %1302 = vset.pattern.permute.xlu0 0
        %1303 = vperm.xlu0 %1302, %v1265
        %v1304 = vpop.permute.xlu0 %1303
        %v1307 = vsel %vm379, %v1250, 0
        %v1310 = vsel %vm379, %v1251, 0
        %v1313 = vsel %vm379, %v1252, 0
        %v1316 = vsel %vm379, %v1253, 0
        %v1319 = vsel %vm379, %v1254, 0
        %v1322 = vsel %vm379, %v1255, 0
        %v1325 = vsel %vm379, %v1256, 0
        %v1328 = vsel %vm379, %v1257, 0
        %1330 = vmatprep.subr.mxu0 0.0
        %v1331 = vand.u32 %v1242, 4294901760
        %1332 = vmatpush1.msra.mxu0 %v1331
        %1333 = vmatprep.subr.mxu0 0.0
        %v1334 = vand.u32 %v1243, 4294901760
        %1335 = vmatpush1.msra.mxu0 %v1334
        %1336 = vmatprep.subr.mxu0 0.0
        %v1337 = vand.u32 %v1244, 4294901760
        %1338 = vmatpush1.msra.mxu0 %v1337
        %1339 = vmatprep.subr.mxu0 0.0
        %v1340 = vand.u32 %v1245, 4294901760
        %1341 = vmatpush1.msra.mxu0 %v1340
        %1342 = vmatprep.subr.mxu0 0.0
        %v1343 = vand.u32 %v1246, 4294901760
        %1344 = vmatpush1.msra.mxu0 %v1343
        %1345 = vmatprep.subr.mxu0 0.0
        %v1346 = vand.u32 %v1247, 4294901760
        %1347 = vmatpush1.msra.mxu0 %v1346
        %1348 = vmatprep.subr.mxu0 0.0
        %v1349 = vand.u32 %v1248, 4294901760
        %1350 = vmatpush1.msra.mxu0 %v1349
        %1351 = vmatprep.subr.mxu0 0.0
        %v1352 = vand.u32 %v1249, 4294901760
        %1353 = vmatpush1.msra.mxu0 %v1352
        %1354 = vmatprep.subr.mxu0 0.0
        %1355 = vmatpush1.msra.mxu0 0.0
        %1356 = vmatprep.subr.mxu0 0.0
        %1357 = vmatpush1.msra.mxu0 0.0
        %1358 = vmatprep.subr.mxu0 0.0
        %1359 = vmatpush1.msra.mxu0 0.0
        %1360 = vmatprep.subr.mxu0 0.0
        %1361 = vmatpush1.msra.mxu0 0.0
        %1362 = vmatprep.subr.mxu0 0.0
        %1363 = vmatpush1.msra.mxu0 0.0
        %1364 = vmatprep.subr.mxu0 0.0
        %1365 = vmatpush1.msra.mxu0 0.0
        %1366 = vmatprep.subr.mxu0 0.0
        %1367 = vmatpush1.msra.mxu0 0.0
        %1368 = vmatprep.subr.mxu0 0.0
        %1369 = vmatpush1.msra.mxu0 0.0
        %1370 = vmatprep.subr.mxu0 0.0
        %1371 = vmatpush1.msra.mxu0 0.0
        %1372 = vmatprep.subr.mxu0 0.0
        %1373 = vmatpush1.msra.mxu0 0.0
        %1374 = vmatprep.subr.mxu0 0.0
        %1375 = vmatpush1.msra.mxu0 0.0
        %1376 = vmatprep.subr.mxu0 0.0
        %1377 = vmatpush1.msra.mxu0 0.0
        %1378 = vmatprep.subr.mxu0 0.0
        %1379 = vmatpush1.msra.mxu0 0.0
        %1380 = vmatprep.subr.mxu0 0.0
        %1381 = vmatpush1.msra.mxu0 0.0
        %1382 = vmatprep.subr.mxu0 0.0
        %1383 = vmatpush1.msra.mxu0 0.0
        %1384 = vmatprep.subr.mxu0 0.0
        %1385 = vmatpush1.msra.mxu0 0.0
        %1386 = vmatprep.subr.mxu0 0.0
        %1387 = vmatpush1.msra.mxu0 0.0
        %1388 = vmatprep.subr.mxu0 0.0
        %1389 = vmatpush1.msra.mxu0 0.0
        %1390 = vmatprep.subr.mxu0 0.0
        %1391 = vmatpush1.msra.mxu0 0.0
        %1392 = vmatprep.subr.mxu0 0.0
        %1393 = vmatpush1.msra.mxu0 0.0
        %1394 = vmatprep.subr.mxu0 0.0
        %1395 = vmatpush1.msra.mxu0 0.0
        %1396 = vmatprep.subr.mxu0 0.0
        %1397 = vmatpush1.msra.mxu0 0.0
        %1398 = vmatprep.subr.mxu0 0.0
        %1399 = vmatpush1.msra.mxu0 0.0
        %1400 = vmatprep.subr.mxu0 0.0
        %1401 = vmatpush1.msra.mxu0 0.0
        %1402 = vmatprep.mubr.f32.mxu0 0.0
        %v1403 = vand.u32 %v1307, 4294901760
        %v1404 = vsub.f32 %v1307, %v1403
        %v1405 = vand.u32 %v1404, 4294901760
        %v1406 = vsub.f32 %v1404, %v1405
        %v1407 = vand.u32 %v1406, 4294901760
        %1408 = vmatmul.mubr.f32.gmra.mrb[0].mxu0 %v1407
        %v1409 = vpop.f32.mrb[0].mxu0
        %v1410 = vadd.f32 %v1269, %v1409
        %v1411 = vpop.f32.mrb[0].mxu0
        %1412 = vmatprep.mubr.f32.mxu0 0.0
        %v1413 = vand.u32 %v1310, 4294901760
        %v1414 = vsub.f32 %v1310, %v1413
        %v1415 = vand.u32 %v1414, 4294901760
        %v1416 = vsub.f32 %v1414, %v1415
        %v1417 = vand.u32 %v1416, 4294901760
        %1418 = vmatmul.mubr.f32.gmra.mrb[0].mxu0 %v1417
        %v1419 = vpop.f32.mrb[0].mxu0
        %v1420 = vadd.f32 %v1274, %v1419
        %v1421 = vpop.f32.mrb[0].mxu0
        %1422 = vmatprep.mubr.f32.mxu0 0.0
        %v1423 = vand.u32 %v1313, 4294901760
        %v1424 = vsub.f32 %v1313, %v1423
        %v1425 = vand.u32 %v1424, 4294901760
        %v1426 = vsub.f32 %v1424, %v1425
        %v1427 = vand.u32 %v1426, 4294901760
        %1428 = vmatmul.mubr.f32.gmra.mrb[0].mxu0 %v1427
        %v1429 = vpop.f32.mrb[0].mxu0
        %v1430 = vadd.f32 %v1279, %v1429
        %v1431 = vpop.f32.mrb[0].mxu0
        %1432 = vmatprep.mubr.f32.mxu0 0.0
        %v1433 = vand.u32 %v1316, 4294901760
        %v1434 = vsub.f32 %v1316, %v1433
        %v1435 = vand.u32 %v1434, 4294901760
        %v1436 = vsub.f32 %v1434, %v1435
        %v1437 = vand.u32 %v1436, 4294901760
        %1438 = vmatmul.mubr.f32.gmra.mrb[0].mxu0 %v1437
        %v1439 = vpop.f32.mrb[0].mxu0
        %v1440 = vadd.f32 %v1284, %v1439
        %v1441 = vpop.f32.mrb[0].mxu0
        %1442 = vmatprep.mubr.f32.mxu0 0.0
        %v1443 = vand.u32 %v1319, 4294901760
        %v1444 = vsub.f32 %v1319, %v1443
        %v1445 = vand.u32 %v1444, 4294901760
        %v1446 = vsub.f32 %v1444, %v1445
        %v1447 = vand.u32 %v1446, 4294901760
        %1448 = vmatmul.mubr.f32.gmra.mrb[0].mxu0 %v1447
        %v1449 = vpop.f32.mrb[0].mxu0
        %v1450 = vadd.f32 %v1289, %v1449
        %v1451 = vpop.f32.mrb[0].mxu0
        %1452 = vmatprep.mubr.f32.mxu0 0.0
        %v1453 = vand.u32 %v1322, 4294901760
        %v1454 = vsub.f32 %v1322, %v1453
        %v1455 = vand.u32 %v1454, 4294901760
        %v1456 = vsub.f32 %v1454, %v1455
        %v1457 = vand.u32 %v1456, 4294901760
        %1458 = vmatmul.mubr.f32.gmra.mrb[0].mxu0 %v1457
        %v1459 = vpop.f32.mrb[0].mxu0
        %v1460 = vadd.f32 %v1294, %v1459
        %v1461 = vpop.f32.mrb[0].mxu0
        %1462 = vmatprep.mubr.f32.mxu0 0.0
        %v1463 = vand.u32 %v1325, 4294901760
        %v1464 = vsub.f32 %v1325, %v1463
        %v1465 = vand.u32 %v1464, 4294901760
        %v1466 = vsub.f32 %v1464, %v1465
        %v1467 = vand.u32 %v1466, 4294901760
        %1468 = vmatmul.mubr.f32.gmra.mrb[0].mxu0 %v1467
        %v1469 = vpop.f32.mrb[0].mxu0
        %v1470 = vadd.f32 %v1299, %v1469
        %v1471 = vpop.f32.mrb[0].mxu0
        %1472 = vmatprep.mubr.f32.mxu0 0.0
        %v1473 = vand.u32 %v1328, 4294901760
        %v1474 = vsub.f32 %v1328, %v1473
        %v1475 = vand.u32 %v1474, 4294901760
        %v1476 = vsub.f32 %v1474, %v1475
        %v1477 = vand.u32 %v1476, 4294901760
        %1478 = vmatmul.mubr.f32.gmra.mrb[0].mxu0 %v1477
        %v1479 = vpop.f32.mrb[0].mxu0
        %v1480 = vadd.f32 %v1304, %v1479
        %v1481 = vpop.f32.mrb[0].mxu0
        %1482 = vdwg.mxu0
        %1483 = vmatprep.subr.mxu0 0.0
        %v1484 = vand.u32 %v1242, 4294901760
        %v1485 = vsub.f32 %v1242, %v1484
        %v1486 = vand.u32 %v1485, 4294901760
        %v1487 = vsub.f32 %v1485, %v1486
        %v1488 = vand.u32 %v1487, 4294901760
        %1489 = vmatpush1.msra.mxu0 %v1488
        %1490 = vmatprep.subr.mxu0 0.0
        %v1491 = vand.u32 %v1243, 4294901760
        %v1492 = vsub.f32 %v1243, %v1491
        %v1493 = vand.u32 %v1492, 4294901760
        %v1494 = vsub.f32 %v1492, %v1493
        %v1495 = vand.u32 %v1494, 4294901760
        %1496 = vmatpush1.msra.mxu0 %v1495
        %1497 = vmatprep.subr.mxu0 0.0
        %v1498 = vand.u32 %v1244, 4294901760
        %v1499 = vsub.f32 %v1244, %v1498
        %v1500 = vand.u32 %v1499, 4294901760
        %v1501 = vsub.f32 %v1499, %v1500
        %v1502 = vand.u32 %v1501, 4294901760
        %1503 = vmatpush1.msra.mxu0 %v1502
        %1504 = vmatprep.subr.mxu0 0.0
        %v1505 = vand.u32 %v1245, 4294901760
        %v1506 = vsub.f32 %v1245, %v1505
        %v1507 = vand.u32 %v1506, 4294901760
        %v1508 = vsub.f32 %v1506, %v1507
        %v1509 = vand.u32 %v1508, 4294901760
        %1510 = vmatpush1.msra.mxu0 %v1509
        %1511 = vmatprep.subr.mxu0 0.0
        %v1512 = vand.u32 %v1246, 4294901760
        %v1513 = vsub.f32 %v1246, %v1512
        %v1514 = vand.u32 %v1513, 4294901760
        %v1515 = vsub.f32 %v1513, %v1514
        %v1516 = vand.u32 %v1515, 4294901760
        %1517 = vmatpush1.msra.mxu0 %v1516
        %1518 = vmatprep.subr.mxu0 0.0
        %v1519 = vand.u32 %v1247, 4294901760
        %v1520 = vsub.f32 %v1247, %v1519
        %v1521 = vand.u32 %v1520, 4294901760
        %v1522 = vsub.f32 %v1520, %v1521
        %v1523 = vand.u32 %v1522, 4294901760
        %1524 = vmatpush1.msra.mxu0 %v1523
        %1525 = vmatprep.subr.mxu0 0.0
        %v1526 = vand.u32 %v1248, 4294901760
        %v1527 = vsub.f32 %v1248, %v1526
        %v1528 = vand.u32 %v1527, 4294901760
        %v1529 = vsub.f32 %v1527, %v1528
        %v1530 = vand.u32 %v1529, 4294901760
        %1531 = vmatpush1.msra.mxu0 %v1530
        %1532 = vmatprep.subr.mxu0 0.0
        %v1533 = vand.u32 %v1249, 4294901760
        %v1534 = vsub.f32 %v1249, %v1533
        %v1535 = vand.u32 %v1534, 4294901760
        %v1536 = vsub.f32 %v1534, %v1535
        %v1537 = vand.u32 %v1536, 4294901760
        %1538 = vmatpush1.msra.mxu0 %v1537
        %1539 = vmatprep.subr.mxu0 0.0
        %1540 = vmatpush1.msra.mxu0 0.0
        %1541 = vmatprep.subr.mxu0 0.0
        %1542 = vmatpush1.msra.mxu0 0.0
        %1543 = vmatprep.subr.mxu0 0.0
        %1544 = vmatpush1.msra.mxu0 0.0
        %1545 = vmatprep.subr.mxu0 0.0
        %1546 = vmatpush1.msra.mxu0 0.0
        %1547 = vmatprep.subr.mxu0 0.0
        %1548 = vmatpush1.msra.mxu0 0.0
        %1549 = vmatprep.subr.mxu0 0.0
        %1550 = vmatpush1.msra.mxu0 0.0
        %1551 = vmatprep.subr.mxu0 0.0
        %1552 = vmatpush1.msra.mxu0 0.0
        %1553 = vmatprep.subr.mxu0 0.0
        %1554 = vmatpush1.msra.mxu0 0.0
        %1555 = vmatprep.subr.mxu0 0.0
        %1556 = vmatpush1.msra.mxu0 0.0
        %1557 = vmatprep.subr.mxu0 0.0
        %1558 = vmatpush1.msra.mxu0 0.0
        %1559 = vmatprep.subr.mxu0 0.0
        %1560 = vmatpush1.msra.mxu0 0.0
        %1561 = vmatprep.subr.mxu0 0.0
        %1562 = vmatpush1.msra.mxu0 0.0
        %1563 = vmatprep.subr.mxu0 0.0
        %1564 = vmatpush1.msra.mxu0 0.0
        %1565 = vmatprep.subr.mxu0 0.0
        %1566 = vmatpush1.msra.mxu0 0.0
        %1567 = vmatprep.subr.mxu0 0.0
        %1568 = vmatpush1.msra.mxu0 0.0
        %1569 = vmatprep.subr.mxu0 0.0
        %1570 = vmatpush1.msra.mxu0 0.0
        %1571 = vmatprep.subr.mxu0 0.0
        %1572 = vmatpush1.msra.mxu0 0.0
        %1573 = vmatprep.subr.mxu0 0.0
        %1574 = vmatpush1.msra.mxu0 0.0
        %1575 = vmatprep.subr.mxu0 0.0
        %1576 = vmatpush1.msra.mxu0 0.0
        %1577 = vmatprep.subr.mxu0 0.0
        %1578 = vmatpush1.msra.mxu0 0.0
        %1579 = vmatprep.subr.mxu0 0.0
        %1580 = vmatpush1.msra.mxu0 0.0
        %1581 = vmatprep.subr.mxu0 0.0
        %1582 = vmatpush1.msra.mxu0 0.0
        %1583 = vmatprep.subr.mxu0 0.0
        %1584 = vmatpush1.msra.mxu0 0.0
        %1585 = vmatprep.subr.mxu0 0.0
        %1586 = vmatpush1.msra.mxu0 0.0
        %1587 = vmatprep.mubr.f32.mxu0 0.0
        %v1588 = vand.u32 %v1307, 4294901760
        %1589 = vmatmul.mubr.f32.gmra.mrb[0].mxu0 %v1588
        %v1590 = vpop.f32.mrb[0].mxu0
        %v1591 = vadd.f32 %v1410, %v1590
        %v1592 = vpop.f32.mrb[0].mxu0
        %1593 = vmatprep.mubr.f32.mxu0 0.0
        %v1594 = vand.u32 %v1310, 4294901760
        %1595 = vmatmul.mubr.f32.gmra.mrb[0].mxu0 %v1594
        %v1596 = vpop.f32.mrb[0].mxu0
        %v1597 = vadd.f32 %v1420, %v1596
        %v1598 = vpop.f32.mrb[0].mxu0
        %1599 = vmatprep.mubr.f32.mxu0 0.0
        %v1600 = vand.u32 %v1313, 4294901760
        %1601 = vmatmul.mubr.f32.gmra.mrb[0].mxu0 %v1600
        %v1602 = vpop.f32.mrb[0].mxu0
        %v1603 = vadd.f32 %v1430, %v1602
        %v1604 = vpop.f32.mrb[0].mxu0
        %1605 = vmatprep.mubr.f32.mxu0 0.0
        %v1606 = vand.u32 %v1316, 4294901760
        %1607 = vmatmul.mubr.f32.gmra.mrb[0].mxu0 %v1606
        %v1608 = vpop.f32.mrb[0].mxu0
        %v1609 = vadd.f32 %v1440, %v1608
        %v1610 = vpop.f32.mrb[0].mxu0
        %1611 = vmatprep.mubr.f32.mxu0 0.0
        %v1612 = vand.u32 %v1319, 4294901760
        %1613 = vmatmul.mubr.f32.gmra.mrb[0].mxu0 %v1612
        %v1614 = vpop.f32.mrb[0].mxu0
        %v1615 = vadd.f32 %v1450, %v1614
        %v1616 = vpop.f32.mrb[0].mxu0
        %1617 = vmatprep.mubr.f32.mxu0 0.0
        %v1618 = vand.u32 %v1322, 4294901760
        %1619 = vmatmul.mubr.f32.gmra.mrb[0].mxu0 %v1618
        %v1620 = vpop.f32.mrb[0].mxu0
        %v1621 = vadd.f32 %v1460, %v1620
        %v1622 = vpop.f32.mrb[0].mxu0
        %1623 = vmatprep.mubr.f32.mxu0 0.0
        %v1624 = vand.u32 %v1325, 4294901760
        %1625 = vmatmul.mubr.f32.gmra.mrb[0].mxu0 %v1624
        %v1626 = vpop.f32.mrb[0].mxu0
        %v1627 = vadd.f32 %v1470, %v1626
        %v1628 = vpop.f32.mrb[0].mxu0
        %1629 = vmatprep.mubr.f32.mxu0 0.0
        %v1630 = vand.u32 %v1328, 4294901760
        %1631 = vmatmul.mubr.f32.gmra.mrb[0].mxu0 %v1630
        %v1632 = vpop.f32.mrb[0].mxu0
        %v1633 = vadd.f32 %v1480, %v1632
        %v1634 = vpop.f32.mrb[0].mxu0
        %1635 = vdwg.mxu0
        %1636 = vmatprep.subr.mxu0 0.0
        %v1637 = vand.u32 %v1242, 4294901760
        %v1638 = vsub.f32 %v1242, %v1637
        %1639 = vmatpush1.msra.mxu0 %v1638
        %1640 = vmatprep.subr.mxu0 0.0
        %v1641 = vand.u32 %v1243, 4294901760
        %v1642 = vsub.f32 %v1243, %v1641
        %1643 = vmatpush1.msra.mxu0 %v1642
        %1644 = vmatprep.subr.mxu0 0.0
        %v1645 = vand.u32 %v1244, 4294901760
        %v1646 = vsub.f32 %v1244, %v1645
        %1647 = vmatpush1.msra.mxu0 %v1646
        %1648 = vmatprep.subr.mxu0 0.0
        %v1649 = vand.u32 %v1245, 4294901760
        %v1650 = vsub.f32 %v1245, %v1649
        %1651 = vmatpush1.msra.mxu0 %v1650
        %1652 = vmatprep.subr.mxu0 0.0
        %v1653 = vand.u32 %v1246, 4294901760
        %v1654 = vsub.f32 %v1246, %v1653
        %1655 = vmatpush1.msra.mxu0 %v1654
        %1656 = vmatprep.subr.mxu0 0.0
        %v1657 = vand.u32 %v1247, 4294901760
        %v1658 = vsub.f32 %v1247, %v1657
        %1659 = vmatpush1.msra.mxu0 %v1658
        %1660 = vmatprep.subr.mxu0 0.0
        %v1661 = vand.u32 %v1248, 4294901760
        %v1662 = vsub.f32 %v1248, %v1661
        %1663 = vmatpush1.msra.mxu0 %v1662
        %1664 = vmatprep.subr.mxu0 0.0
        %v1665 = vand.u32 %v1249, 4294901760
        %v1666 = vsub.f32 %v1249, %v1665
        %1667 = vmatpush1.msra.mxu0 %v1666
        %1668 = vmatprep.subr.mxu0 0.0
        %1669 = vmatpush1.msra.mxu0 0.0
        %1670 = vmatprep.subr.mxu0 0.0
        %1671 = vmatpush1.msra.mxu0 0.0
        %1672 = vmatprep.subr.mxu0 0.0
        %1673 = vmatpush1.msra.mxu0 0.0
        %1674 = vmatprep.subr.mxu0 0.0
        %1675 = vmatpush1.msra.mxu0 0.0
        %1676 = vmatprep.subr.mxu0 0.0
        %1677 = vmatpush1.msra.mxu0 0.0
        %1678 = vmatprep.subr.mxu0 0.0
        %1679 = vmatpush1.msra.mxu0 0.0
        %1680 = vmatprep.subr.mxu0 0.0
        %1681 = vmatpush1.msra.mxu0 0.0
        %1682 = vmatprep.subr.mxu0 0.0
        %1683 = vmatpush1.msra.mxu0 0.0
        %1684 = vmatprep.subr.mxu0 0.0
        %1685 = vmatpush1.msra.mxu0 0.0
        %1686 = vmatprep.subr.mxu0 0.0
        %1687 = vmatpush1.msra.mxu0 0.0
        %1688 = vmatprep.subr.mxu0 0.0
        %1689 = vmatpush1.msra.mxu0 0.0
        %1690 = vmatprep.subr.mxu0 0.0
        %1691 = vmatpush1.msra.mxu0 0.0
        %1692 = vmatprep.subr.mxu0 0.0
        %1693 = vmatpush1.msra.mxu0 0.0
        %1694 = vmatprep.subr.mxu0 0.0
        %1695 = vmatpush1.msra.mxu0 0.0
        %1696 = vmatprep.subr.mxu0 0.0
        %1697 = vmatpush1.msra.mxu0 0.0
        %1698 = vmatprep.subr.mxu0 0.0
        %1699 = vmatpush1.msra.mxu0 0.0
        %1700 = vmatprep.subr.mxu0 0.0
        %1701 = vmatpush1.msra.mxu0 0.0
        %1702 = vmatprep.subr.mxu0 0.0
        %1703 = vmatpush1.msra.mxu0 0.0
        %1704 = vmatprep.subr.mxu0 0.0
        %1705 = vmatpush1.msra.mxu0 0.0
        %1706 = vmatprep.subr.mxu0 0.0
        %1707 = vmatpush1.msra.mxu0 0.0
        %1708 = vmatprep.subr.mxu0 0.0
        %1709 = vmatpush1.msra.mxu0 0.0
        %1710 = vmatprep.subr.mxu0 0.0
        %1711 = vmatpush1.msra.mxu0 0.0
        %1712 = vmatprep.subr.mxu0 0.0
        %1713 = vmatpush1.msra.mxu0 0.0
        %1714 = vmatprep.subr.mxu0 0.0
        %1715 = vmatpush1.msra.mxu0 0.0
        %1716 = vmatprep.mubr.f32.mxu0 0.0
        %v1717 = vand.u32 %v1307, 4294901760
        %v1718 = vsub.f32 %v1307, %v1717
        %1719 = vmatmul.mubr.f32.gmra.mrb[0].mxu0 %v1718
        %v1720 = vpop.f32.mrb[0].mxu0
        %v1721 = vadd.f32 %v1591, %v1720
        %v1722 = vpop.f32.mrb[0].mxu0
        %1723 = vmatprep.mubr.f32.mxu0 0.0
        %v1724 = vand.u32 %v1310, 4294901760
        %v1725 = vsub.f32 %v1310, %v1724
        %1726 = vmatmul.mubr.f32.gmra.mrb[0].mxu0 %v1725
        %v1727 = vpop.f32.mrb[0].mxu0
        %v1728 = vadd.f32 %v1597, %v1727
        %v1729 = vpop.f32.mrb[0].mxu0
        %1730 = vmatprep.mubr.f32.mxu0 0.0
        %v1731 = vand.u32 %v1313, 4294901760
        %v1732 = vsub.f32 %v1313, %v1731
        %1733 = vmatmul.mubr.f32.gmra.mrb[0].mxu0 %v1732
        %v1734 = vpop.f32.mrb[0].mxu0
        %v1735 = vadd.f32 %v1603, %v1734
        %v1736 = vpop.f32.mrb[0].mxu0
        %1737 = vmatprep.mubr.f32.mxu0 0.0
        %v1738 = vand.u32 %v1316, 4294901760
        %v1739 = vsub.f32 %v1316, %v1738
        %1740 = vmatmul.mubr.f32.gmra.mrb[0].mxu0 %v1739
        %v1741 = vpop.f32.mrb[0].mxu0
        %v1742 = vadd.f32 %v1609, %v1741
        %v1743 = vpop.f32.mrb[0].mxu0
        %1744 = vmatprep.mubr.f32.mxu0 0.0
        %v1745 = vand.u32 %v1319, 4294901760
        %v1746 = vsub.f32 %v1319, %v1745
        %1747 = vmatmul.mubr.f32.gmra.mrb[0].mxu0 %v1746
        %v1748 = vpop.f32.mrb[0].mxu0
        %v1749 = vadd.f32 %v1615, %v1748
        %v1750 = vpop.f32.mrb[0].mxu0
        %1751 = vmatprep.mubr.f32.mxu0 0.0
        %v1752 = vand.u32 %v1322, 4294901760
        %v1753 = vsub.f32 %v1322, %v1752
        %1754 = vmatmul.mubr.f32.gmra.mrb[0].mxu0 %v1753
        %v1755 = vpop.f32.mrb[0].mxu0
        %v1756 = vadd.f32 %v1621, %v1755
        %v1757 = vpop.f32.mrb[0].mxu0
        %1758 = vmatprep.mubr.f32.mxu0 0.0
        %v1759 = vand.u32 %v1325, 4294901760
        %v1760 = vsub.f32 %v1325, %v1759
        %1761 = vmatmul.mubr.f32.gmra.mrb[0].mxu0 %v1760
        %v1762 = vpop.f32.mrb[0].mxu0
        %v1763 = vadd.f32 %v1627, %v1762
        %v1764 = vpop.f32.mrb[0].mxu0
        %1765 = vmatprep.mubr.f32.mxu0 0.0
        %v1766 = vand.u32 %v1328, 4294901760
        %v1767 = vsub.f32 %v1328, %v1766
        %1768 = vmatmul.mubr.f32.gmra.mrb[0].mxu0 %v1767
        %v1769 = vpop.f32.mrb[0].mxu0
        %v1770 = vadd.f32 %v1633, %v1769
        %v1771 = vpop.f32.mrb[0].mxu0
        %1772 = vdwg.mxu0
        %1773 = vmatprep.subr.mxu0 0.0
        %v1774 = vand.u32 %v1242, 4294901760
        %1775 = vmatpush1.msra.mxu0 %v1774
        %1776 = vmatprep.subr.mxu0 0.0
        %v1777 = vand.u32 %v1243, 4294901760
        %1778 = vmatpush1.msra.mxu0 %v1777
        %1779 = vmatprep.subr.mxu0 0.0
        %v1780 = vand.u32 %v1244, 4294901760
        %1781 = vmatpush1.msra.mxu0 %v1780
        %1782 = vmatprep.subr.mxu0 0.0
        %v1783 = vand.u32 %v1245, 4294901760
        %1784 = vmatpush1.msra.mxu0 %v1783
        %1785 = vmatprep.subr.mxu0 0.0
        %v1786 = vand.u32 %v1246, 4294901760
        %1787 = vmatpush1.msra.mxu0 %v1786
        %1788 = vmatprep.subr.mxu0 0.0
        %v1789 = vand.u32 %v1247, 4294901760
        %1790 = vmatpush1.msra.mxu0 %v1789
        %1791 = vmatprep.subr.mxu0 0.0
        %v1792 = vand.u32 %v1248, 4294901760
        %1793 = vmatpush1.msra.mxu0 %v1792
        %1794 = vmatprep.subr.mxu0 0.0
        %v1795 = vand.u32 %v1249, 4294901760
        %1796 = vmatpush1.msra.mxu0 %v1795
        %1797 = vmatprep.subr.mxu0 0.0
        %1798 = vmatpush1.msra.mxu0 0.0
        %1799 = vmatprep.subr.mxu0 0.0
        %1800 = vmatpush1.msra.mxu0 0.0
        %1801 = vmatprep.subr.mxu0 0.0
        %1802 = vmatpush1.msra.mxu0 0.0
        %1803 = vmatprep.subr.mxu0 0.0
        %1804 = vmatpush1.msra.mxu0 0.0
        %1805 = vmatprep.subr.mxu0 0.0
        %1806 = vmatpush1.msra.mxu0 0.0
        %1807 = vmatprep.subr.mxu0 0.0
        %1808 = vmatpush1.msra.mxu0 0.0
        %1809 = vmatprep.subr.mxu0 0.0
        %1810 = vmatpush1.msra.mxu0 0.0
        %1811 = vmatprep.subr.mxu0 0.0
        %1812 = vmatpush1.msra.mxu0 0.0
        %1813 = vmatprep.subr.mxu0 0.0
        %1814 = vmatpush1.msra.mxu0 0.0
        %1815 = vmatprep.subr.mxu0 0.0
        %1816 = vmatpush1.msra.mxu0 0.0
        %1817 = vmatprep.subr.mxu0 0.0
        %1818 = vmatpush1.msra.mxu0 0.0
        %1819 = vmatprep.subr.mxu0 0.0
        %1820 = vmatpush1.msra.mxu0 0.0
        %1821 = vmatprep.subr.mxu0 0.0
        %1822 = vmatpush1.msra.mxu0 0.0
        %1823 = vmatprep.subr.mxu0 0.0
        %1824 = vmatpush1.msra.mxu0 0.0
        %1825 = vmatprep.subr.mxu0 0.0
        %1826 = vmatpush1.msra.mxu0 0.0
        %1827 = vmatprep.subr.mxu0 0.0
        %1828 = vmatpush1.msra.mxu0 0.0
        %1829 = vmatprep.subr.mxu0 0.0
        %1830 = vmatpush1.msra.mxu0 0.0
        %1831 = vmatprep.subr.mxu0 0.0
        %1832 = vmatpush1.msra.mxu0 0.0
        %1833 = vmatprep.subr.mxu0 0.0
        %1834 = vmatpush1.msra.mxu0 0.0
        %1835 = vmatprep.subr.mxu0 0.0
        %1836 = vmatpush1.msra.mxu0 0.0
        %1837 = vmatprep.subr.mxu0 0.0
        %1838 = vmatpush1.msra.mxu0 0.0
        %1839 = vmatprep.subr.mxu0 0.0
        %1840 = vmatpush1.msra.mxu0 0.0
        %1841 = vmatprep.subr.mxu0 0.0
        %1842 = vmatpush1.msra.mxu0 0.0
        %1843 = vmatprep.subr.mxu0 0.0
        %1844 = vmatpush1.msra.mxu0 0.0
        %1845 = vmatprep.mubr.f32.mxu0 0.0
        %v1846 = vand.u32 %v1307, 4294901760
        %v1847 = vsub.f32 %v1307, %v1846
        %v1848 = vand.u32 %v1847, 4294901760
        %1849 = vmatmul.mubr.f32.gmra.mrb[0].mxu0 %v1848
        %v1850 = vpop.f32.mrb[0].mxu0
        %v1851 = vadd.f32 %v1721, %v1850
        %v1852 = vpop.f32.mrb[0].mxu0
        %1853 = vmatprep.mubr.f32.mxu0 0.0
        %v1854 = vand.u32 %v1310, 4294901760
        %v1855 = vsub.f32 %v1310, %v1854
        %v1856 = vand.u32 %v1855, 4294901760
        %1857 = vmatmul.mubr.f32.gmra.mrb[0].mxu0 %v1856
        %v1858 = vpop.f32.mrb[0].mxu0
        %v1859 = vadd.f32 %v1728, %v1858
        %v1860 = vpop.f32.mrb[0].mxu0
        %1861 = vmatprep.mubr.f32.mxu0 0.0
        %v1862 = vand.u32 %v1313, 4294901760
        %v1863 = vsub.f32 %v1313, %v1862
        %v1864 = vand.u32 %v1863, 4294901760
        %1865 = vmatmul.mubr.f32.gmra.mrb[0].mxu0 %v1864
        %v1866 = vpop.f32.mrb[0].mxu0
        %v1867 = vadd.f32 %v1735, %v1866
        %v1868 = vpop.f32.mrb[0].mxu0
        %1869 = vmatprep.mubr.f32.mxu0 0.0
        %v1870 = vand.u32 %v1316, 4294901760
        %v1871 = vsub.f32 %v1316, %v1870
        %v1872 = vand.u32 %v1871, 4294901760
        %1873 = vmatmul.mubr.f32.gmra.mrb[0].mxu0 %v1872
        %v1874 = vpop.f32.mrb[0].mxu0
        %v1875 = vadd.f32 %v1742, %v1874
        %v1876 = vpop.f32.mrb[0].mxu0
        %1877 = vmatprep.mubr.f32.mxu0 0.0
        %v1878 = vand.u32 %v1319, 4294901760
        %v1879 = vsub.f32 %v1319, %v1878
        %v1880 = vand.u32 %v1879, 4294901760
        %1881 = vmatmul.mubr.f32.gmra.mrb[0].mxu0 %v1880
        %v1882 = vpop.f32.mrb[0].mxu0
        %v1883 = vadd.f32 %v1749, %v1882
        %v1884 = vpop.f32.mrb[0].mxu0
        %1885 = vmatprep.mubr.f32.mxu0 0.0
        %v1886 = vand.u32 %v1322, 4294901760
        %v1887 = vsub.f32 %v1322, %v1886
        %v1888 = vand.u32 %v1887, 4294901760
        %1889 = vmatmul.mubr.f32.gmra.mrb[0].mxu0 %v1888
        %v1890 = vpop.f32.mrb[0].mxu0
        %v1891 = vadd.f32 %v1756, %v1890
        %v1892 = vpop.f32.mrb[0].mxu0
        %1893 = vmatprep.mubr.f32.mxu0 0.0
        %v1894 = vand.u32 %v1325, 4294901760
        %v1895 = vsub.f32 %v1325, %v1894
        %v1896 = vand.u32 %v1895, 4294901760
        %1897 = vmatmul.mubr.f32.gmra.mrb[0].mxu0 %v1896
        %v1898 = vpop.f32.mrb[0].mxu0
        %v1899 = vadd.f32 %v1763, %v1898
        %v1900 = vpop.f32.mrb[0].mxu0
        %1901 = vmatprep.mubr.f32.mxu0 0.0
        %v1902 = vand.u32 %v1328, 4294901760
        %v1903 = vsub.f32 %v1328, %v1902
        %v1904 = vand.u32 %v1903, 4294901760
        %1905 = vmatmul.mubr.f32.gmra.mrb[0].mxu0 %v1904
        %v1906 = vpop.f32.mrb[0].mxu0
        %v1907 = vadd.f32 %v1770, %v1906
        %v1908 = vpop.f32.mrb[0].mxu0
        %1909 = vdwg.mxu0
        %1910 = vmatprep.subr.mxu0 0.0
        %v1911 = vand.u32 %v1242, 4294901760
        %v1912 = vsub.f32 %v1242, %v1911
        %v1913 = vand.u32 %v1912, 4294901760
        %1914 = vmatpush1.msra.mxu0 %v1913
        %1915 = vmatprep.subr.mxu0 0.0
        %v1916 = vand.u32 %v1243, 4294901760
        %v1917 = vsub.f32 %v1243, %v1916
        %v1918 = vand.u32 %v1917, 4294901760
        %1919 = vmatpush1.msra.mxu0 %v1918
        %1920 = vmatprep.subr.mxu0 0.0
        %v1921 = vand.u32 %v1244, 4294901760
        %v1922 = vsub.f32 %v1244, %v1921
        %v1923 = vand.u32 %v1922, 4294901760
        %1924 = vmatpush1.msra.mxu0 %v1923
        %1925 = vmatprep.subr.mxu0 0.0
        %v1926 = vand.u32 %v1245, 4294901760
        %v1927 = vsub.f32 %v1245, %v1926
        %v1928 = vand.u32 %v1927, 4294901760
        %1929 = vmatpush1.msra.mxu0 %v1928
        %1930 = vmatprep.subr.mxu0 0.0
        %v1931 = vand.u32 %v1246, 4294901760
        %v1932 = vsub.f32 %v1246, %v1931
        %v1933 = vand.u32 %v1932, 4294901760
        %1934 = vmatpush1.msra.mxu0 %v1933
        %1935 = vmatprep.subr.mxu0 0.0
        %v1936 = vand.u32 %v1247, 4294901760
        %v1937 = vsub.f32 %v1247, %v1936
        %v1938 = vand.u32 %v1937, 4294901760
        %1939 = vmatpush1.msra.mxu0 %v1938
        %1940 = vmatprep.subr.mxu0 0.0
        %v1941 = vand.u32 %v1248, 4294901760
        %v1942 = vsub.f32 %v1248, %v1941
        %v1943 = vand.u32 %v1942, 4294901760
        %1944 = vmatpush1.msra.mxu0 %v1943
        %1945 = vmatprep.subr.mxu0 0.0
        %v1946 = vand.u32 %v1249, 4294901760
        %v1947 = vsub.f32 %v1249, %v1946
        %v1948 = vand.u32 %v1947, 4294901760
        %1949 = vmatpush1.msra.mxu0 %v1948
        %1950 = vmatprep.subr.mxu0 0.0
        %1951 = vmatpush1.msra.mxu0 0.0
        %1952 = vmatprep.subr.mxu0 0.0
        %1953 = vmatpush1.msra.mxu0 0.0
        %1954 = vmatprep.subr.mxu0 0.0
        %1955 = vmatpush1.msra.mxu0 0.0
        %1956 = vmatprep.subr.mxu0 0.0
        %1957 = vmatpush1.msra.mxu0 0.0
        %1958 = vmatprep.subr.mxu0 0.0
        %1959 = vmatpush1.msra.mxu0 0.0
        %1960 = vmatprep.subr.mxu0 0.0
        %1961 = vmatpush1.msra.mxu0 0.0
        %1962 = vmatprep.subr.mxu0 0.0
        %1963 = vmatpush1.msra.mxu0 0.0
        %1964 = vmatprep.subr.mxu0 0.0
        %1965 = vmatpush1.msra.mxu0 0.0
        %1966 = vmatprep.subr.mxu0 0.0
        %1967 = vmatpush1.msra.mxu0 0.0
        %1968 = vmatprep.subr.mxu0 0.0
        %1969 = vmatpush1.msra.mxu0 0.0
        %1970 = vmatprep.subr.mxu0 0.0
        %1971 = vmatpush1.msra.mxu0 0.0
        %1972 = vmatprep.subr.mxu0 0.0
        %1973 = vmatpush1.msra.mxu0 0.0
        %1974 = vmatprep.subr.mxu0 0.0
        %1975 = vmatpush1.msra.mxu0 0.0
        %1976 = vmatprep.subr.mxu0 0.0
        %1977 = vmatpush1.msra.mxu0 0.0
        %1978 = vmatprep.subr.mxu0 0.0
        %1979 = vmatpush1.msra.mxu0 0.0
        %1980 = vmatprep.subr.mxu0 0.0
        %1981 = vmatpush1.msra.mxu0 0.0
        %1982 = vmatprep.subr.mxu0 0.0
        %1983 = vmatpush1.msra.mxu0 0.0
        %1984 = vmatprep.subr.mxu0 0.0
        %1985 = vmatpush1.msra.mxu0 0.0
        %1986 = vmatprep.subr.mxu0 0.0
        %1987 = vmatpush1.msra.mxu0 0.0
        %1988 = vmatprep.subr.mxu0 0.0
        %1989 = vmatpush1.msra.mxu0 0.0
        %1990 = vmatprep.subr.mxu0 0.0
        %1991 = vmatpush1.msra.mxu0 0.0
        %1992 = vmatprep.subr.mxu0 0.0
        %1993 = vmatpush1.msra.mxu0 0.0
        %1994 = vmatprep.subr.mxu0 0.0
        %1995 = vmatpush1.msra.mxu0 0.0
        %1996 = vmatprep.subr.mxu0 0.0
        %1997 = vmatpush1.msra.mxu0 0.0
        %1998 = vmatprep.mubr.f32.mxu0 0.0
        %v1999 = vand.u32 %v1307, 4294901760
        %2000 = vmatmul.mubr.f32.gmra.mrb[0].mxu0 %v1999
        %v2001 = vpop.f32.mrb[0].mxu0
        %v2002 = vadd.f32 %v1851, %v2001
        %v2003 = vpop.f32.mrb[0].mxu0
        %2004 = vmatprep.mubr.f32.mxu0 0.0
        %v2005 = vand.u32 %v1310, 4294901760
        %2006 = vmatmul.mubr.f32.gmra.mrb[0].mxu0 %v2005
        %v2007 = vpop.f32.mrb[0].mxu0
        %v2008 = vadd.f32 %v1859, %v2007
        %v2009 = vpop.f32.mrb[0].mxu0
        %2010 = vmatprep.mubr.f32.mxu0 0.0
        %v2011 = vand.u32 %v1313, 4294901760
        %2012 = vmatmul.mubr.f32.gmra.mrb[0].mxu0 %v2011
        %v2013 = vpop.f32.mrb[0].mxu0
        %v2014 = vadd.f32 %v1867, %v2013
        %v2015 = vpop.f32.mrb[0].mxu0
        %2016 = vmatprep.mubr.f32.mxu0 0.0
        %v2017 = vand.u32 %v1316, 4294901760
        %2018 = vmatmul.mubr.f32.gmra.mrb[0].mxu0 %v2017
        %v2019 = vpop.f32.mrb[0].mxu0
        %v2020 = vadd.f32 %v1875, %v2019
        %v2021 = vpop.f32.mrb[0].mxu0
        %2022 = vmatprep.mubr.f32.mxu0 0.0
        %v2023 = vand.u32 %v1319, 4294901760
        %2024 = vmatmul.mubr.f32.gmra.mrb[0].mxu0 %v2023
        %v2025 = vpop.f32.mrb[0].mxu0
        %v2026 = vadd.f32 %v1883, %v2025
        %v2027 = vpop.f32.mrb[0].mxu0
        %2028 = vmatprep.mubr.f32.mxu0 0.0
        %v2029 = vand.u32 %v1322, 4294901760
        %2030 = vmatmul.mubr.f32.gmra.mrb[0].mxu0 %v2029
        %v2031 = vpop.f32.mrb[0].mxu0
        %v2032 = vadd.f32 %v1891, %v2031
        %v2033 = vpop.f32.mrb[0].mxu0
        %2034 = vmatprep.mubr.f32.mxu0 0.0
        %v2035 = vand.u32 %v1325, 4294901760
        %2036 = vmatmul.mubr.f32.gmra.mrb[0].mxu0 %v2035
        %v2037 = vpop.f32.mrb[0].mxu0
        %v2038 = vadd.f32 %v1899, %v2037
        %v2039 = vpop.f32.mrb[0].mxu0
        %2040 = vmatprep.mubr.f32.mxu0 0.0
        %v2041 = vand.u32 %v1328, 4294901760
        %2042 = vmatmul.mubr.f32.gmra.mrb[0].mxu0 %v2041
        %v2043 = vpop.f32.mrb[0].mxu0
        %v2044 = vadd.f32 %v1907, %v2043
        %v2045 = vpop.f32.mrb[0].mxu0
        %2046 = vdwg.mxu0
        %2047 = vmatprep.subr.mxu0 0.0
        %v2048 = vand.u32 %v1242, 4294901760
        %2049 = vmatpush1.msra.mxu0 %v2048
        %2050 = vmatprep.subr.mxu0 0.0
        %v2051 = vand.u32 %v1243, 4294901760
        %2052 = vmatpush1.msra.mxu0 %v2051
        %2053 = vmatprep.subr.mxu0 0.0
        %v2054 = vand.u32 %v1244, 4294901760
        %2055 = vmatpush1.msra.mxu0 %v2054
        %2056 = vmatprep.subr.mxu0 0.0
        %v2057 = vand.u32 %v1245, 4294901760
        %2058 = vmatpush1.msra.mxu0 %v2057
        %2059 = vmatprep.subr.mxu0 0.0
        %v2060 = vand.u32 %v1246, 4294901760
        %2061 = vmatpush1.msra.mxu0 %v2060
        %2062 = vmatprep.subr.mxu0 0.0
        %v2063 = vand.u32 %v1247, 4294901760
        %2064 = vmatpush1.msra.mxu0 %v2063
        %2065 = vmatprep.subr.mxu0 0.0
        %v2066 = vand.u32 %v1248, 4294901760
        %2067 = vmatpush1.msra.mxu0 %v2066
        %2068 = vmatprep.subr.mxu0 0.0
        %v2069 = vand.u32 %v1249, 4294901760
        %2070 = vmatpush1.msra.mxu0 %v2069
        %2071 = vmatprep.subr.mxu0 0.0
        %2072 = vmatpush1.msra.mxu0 0.0
        %2073 = vmatprep.subr.mxu0 0.0
        %2074 = vmatpush1.msra.mxu0 0.0
        %2075 = vmatprep.subr.mxu0 0.0
        %2076 = vmatpush1.msra.mxu0 0.0
        %2077 = vmatprep.subr.mxu0 0.0
        %2078 = vmatpush1.msra.mxu0 0.0
        %2079 = vmatprep.subr.mxu0 0.0
        %2080 = vmatpush1.msra.mxu0 0.0
        %2081 = vmatprep.subr.mxu0 0.0
        %2082 = vmatpush1.msra.mxu0 0.0
        %2083 = vmatprep.subr.mxu0 0.0
        %2084 = vmatpush1.msra.mxu0 0.0
        %2085 = vmatprep.subr.mxu0 0.0
        %2086 = vmatpush1.msra.mxu0 0.0
        %2087 = vmatprep.subr.mxu0 0.0
        %2088 = vmatpush1.msra.mxu0 0.0
        %2089 = vmatprep.subr.mxu0 0.0
        %2090 = vmatpush1.msra.mxu0 0.0
        %2091 = vmatprep.subr.mxu0 0.0
        %2092 = vmatpush1.msra.mxu0 0.0
        %2093 = vmatprep.subr.mxu0 0.0
        %2094 = vmatpush1.msra.mxu0 0.0
        %2095 = vmatprep.subr.mxu0 0.0
        %2096 = vmatpush1.msra.mxu0 0.0
        %2097 = vmatprep.subr.mxu0 0.0
        %2098 = vmatpush1.msra.mxu0 0.0
        %2099 = vmatprep.subr.mxu0 0.0
        %2100 = vmatpush1.msra.mxu0 0.0
        %2101 = vmatprep.subr.mxu0 0.0
        %2102 = vmatpush1.msra.mxu0 0.0
        %2103 = vmatprep.subr.mxu0 0.0
        %2104 = vmatpush1.msra.mxu0 0.0
        %2105 = vmatprep.subr.mxu0 0.0
        %2106 = vmatpush1.msra.mxu0 0.0
        %2107 = vmatprep.subr.mxu0 0.0
        %2108 = vmatpush1.msra.mxu0 0.0
        %2109 = vmatprep.subr.mxu0 0.0
        %2110 = vmatpush1.msra.mxu0 0.0
        %2111 = vmatprep.subr.mxu0 0.0
        %2112 = vmatpush1.msra.mxu0 0.0
        %2113 = vmatprep.subr.mxu0 0.0
        %2114 = vmatpush1.msra.mxu0 0.0
        %2115 = vmatprep.subr.mxu0 0.0
        %2116 = vmatpush1.msra.mxu0 0.0
        %2117 = vmatprep.subr.mxu0 0.0
        %2118 = vmatpush1.msra.mxu0 0.0
        %2119 = vmatprep.mubr.f32.mxu0 0.0
        %v2120 = vand.u32 %v1307, 4294901760
        %2121 = vmatmul.mubr.f32.gmra.mrb[0].mxu0 %v2120
        %v2122 = vpop.f32.mrb[0].mxu0
        %v2123 = vadd.f32 %v2002, %v2122
        %v2124 = vpop.f32.mrb[0].mxu0
        %2125 = vmatprep.mubr.f32.mxu0 0.0
        %v2126 = vand.u32 %v1310, 4294901760
        %2127 = vmatmul.mubr.f32.gmra.mrb[0].mxu0 %v2126
        %v2128 = vpop.f32.mrb[0].mxu0
        %v2129 = vadd.f32 %v2008, %v2128
        %v2130 = vpop.f32.mrb[0].mxu0
        %2131 = vmatprep.mubr.f32.mxu0 0.0
        %v2132 = vand.u32 %v1313, 4294901760
        %2133 = vmatmul.mubr.f32.gmra.mrb[0].mxu0 %v2132
        %v2134 = vpop.f32.mrb[0].mxu0
        %v2135 = vadd.f32 %v2014, %v2134
        %v2136 = vpop.f32.mrb[0].mxu0
        %2137 = vmatprep.mubr.f32.mxu0 0.0
        %v2138 = vand.u32 %v1316, 4294901760
        %2139 = vmatmul.mubr.f32.gmra.mrb[0].mxu0 %v2138
        %v2140 = vpop.f32.mrb[0].mxu0
        %v2141 = vadd.f32 %v2020, %v2140
        %v2142 = vpop.f32.mrb[0].mxu0
        %2143 = vmatprep.mubr.f32.mxu0 0.0
        %v2144 = vand.u32 %v1319, 4294901760
        %2145 = vmatmul.mubr.f32.gmra.mrb[0].mxu0 %v2144
        %v2146 = vpop.f32.mrb[0].mxu0
        %v2147 = vadd.f32 %v2026, %v2146
        %v2148 = vpop.f32.mrb[0].mxu0
        %2149 = vmatprep.mubr.f32.mxu0 0.0
        %v2150 = vand.u32 %v1322, 4294901760
        %2151 = vmatmul.mubr.f32.gmra.mrb[0].mxu0 %v2150
        %v2152 = vpop.f32.mrb[0].mxu0
        %v2153 = vadd.f32 %v2032, %v2152
        %v2154 = vpop.f32.mrb[0].mxu0
        %2155 = vmatprep.mubr.f32.mxu0 0.0
        %v2156 = vand.u32 %v1325, 4294901760
        %2157 = vmatmul.mubr.f32.gmra.mrb[0].mxu0 %v2156
        %v2158 = vpop.f32.mrb[0].mxu0
        %v2159 = vadd.f32 %v2038, %v2158
        %v2160 = vpop.f32.mrb[0].mxu0
        %2161 = vmatprep.mubr.f32.mxu0 0.0
        %v2162 = vand.u32 %v1328, 4294901760
        %2163 = vmatmul.mubr.f32.gmra.mrb[0].mxu0 %v2162
        %v2164 = vpop.f32.mrb[0].mxu0
        %v2165 = vadd.f32 %v2044, %v2164
        %v2166 = vpop.f32.mrb[0].mxu0
        %2167 = vdwg.mxu0
        %v2168 = vadd.f32 %v2123, %v315
        %v2169 = vadd.f32 %v2129, %v316
        %v2170 = vadd.f32 %v2135, %v317
        %v2171 = vadd.f32 %v2141, %v318
        %v2172 = vadd.f32 %v2147, %v319
        %v2173 = vadd.f32 %v2153, %v320
        %v2174 = vadd.f32 %v2159, %v321
        %v2175 = vadd.f32 %v2165, %v322
        %v2176 = vmax.f32 %v2168, 0.0
        %v2177 = vmax.f32 %v2169, 0.0
        %v2178 = vmax.f32 %v2170, 0.0
        %v2179 = vmax.f32 %v2171, 0.0
        %v2180 = vmax.f32 %v2172, 0.0
        %v2181 = vmax.f32 %v2173, 0.0
        %v2182 = vmax.f32 %v2174, 0.0
        %v2183 = vmax.f32 %v2175, 0.0
        %2184 = vst [vmem:[%s314] sm:$0xff] %v2176
        %2185 = vst [vmem:[%s314 + $0x8] sm:$0xff] %v2177
        %2186 = vst [vmem:[%s314 + $0x10] sm:$0xff] %v2178
        %2187 = vst [vmem:[%s314 + $0x18] sm:$0xff] %v2179
        %2188 = vst [vmem:[%s314 + $0x20] sm:$0xff] %v2180
        %2189 = vst [vmem:[%s314 + $0x28] sm:$0xff] %v2181
        %2190 = vst [vmem:[%s314 + $0x30] sm:$0xff] %v2182
        %2191 = vst [vmem:[%s314 + $0x38] sm:$0xff] %v2183
        %s2192 = sand.u32 %s139, 1
        %s2193 = scalar_lea.sflag [#allocation4], %s2192
        %s2194 = sand.u32 %s139, 1
        %s2195 = smul.addr %s2194, 64
        %s2196 = scalar_lea.vmem [#allocation8], %s2195
        // Predicated region
        $region87: #{tpu_custom_call.1} parent=73 // pred_check
          %p2197 = pneg %p149
        $region88: #{tpu_custom_call.1} parent=73 // pred_check_branch
          %2199 = sbr.rel (%p2197) target = $region90
        $region89: #{tpu_custom_call.1} parent=73 // pred_region
          %s2201 = ssub.s32 1024, 1024
          %2202 = vsyncadd %s2193, %s2201
          %s2203 = smul.addr %s21, 128
          %s2204 = scalar_lea.hbm %s5, %s2203
          %s2205 = sshll.u32 %s2196, 4
          %s2206 = int_to_ptr.vmem [resolvable:$true] %s2205
          %2211 = dma.vmem_to_hbm [thread:$0]  %s2206, 1024, %s2204, %s2193, 128, 256, 8
        $region90: #{tpu_custom_call.1} parent=73 // pred_fallthru
          _
      $region74: #{tpu_custom_call.1} parent=5 // pred_fallthru
        _
      %p2212 = scmp.le.s32.totalorder 2, %s16
      // Predicated region
      $region91: #{tpu_custom_call.1} parent=5 // pred_check
        %p2213 = pneg %p2212
      $region92: #{tpu_custom_call.1} parent=5 // pred_check_branch
        %2215 = sbr.rel (%p2213) target = $region94
      $region93: #{tpu_custom_call.1} parent=5 // pred_region
        %s2216 = ssub.s32 %s16, 2
        // Predicated region
        $region95: #{tpu_custom_call.1} parent=93 // pred_check
          %p2217 = pneg %p155
        $region96: #{tpu_custom_call.1} parent=93 // pred_check_branch
          %2219 = sbr.rel (%p2217) target = $region98
        $region97: #{tpu_custom_call.1} parent=93 // pred_region
          %s2220 = sand.u32 %s140, 1
          %s2221 = scalar_lea.sflag [#allocation4], %s2220
          %s2222 = sand.u32 %s140, 1
          %s2223 = smul.addr %s2222, 64
          %s2224 = scalar_lea.vmem [#allocation8], %s2223
          %2225 = dma.done %s2221, 1024
        $region98: #{tpu_custom_call.1} parent=93 // pred_fallthru
          _
      $region94: #{tpu_custom_call.1} parent=5 // pred_fallthru
        _
    $region6: #{tpu_custom_call.1} parent=1 // loop_footer
      %s20 = sadd.s32 1, %s16
    $region7: #{tpu_custom_call.1} parent=1 // loop_footer_branch
      %15 = sbr.rel target = $region3
    $region8: #{tpu_custom_call.1} parent=1 // loop_exit
      _
    %2226 = vsyncpa [#allocation3], 1
    %s2227 = scalar_lea.sflag [#allocation3], 1
    %2228 = vsyncpa %s2227, 1
    %2229 = vsyncpa [#allocation6], 1
    %2230 = vsyncpa [#allocation4], 1
    %s2231 = scalar_lea.sflag [#allocation4], 1
    %2232 = vsyncpa %s2231, 1

</llo_original>
